<compile_context>
chip_gen: v7x
topology: tpu7x:2x2x1
jax: 0.10.0
libtpu: 0.0.40
codegen_flags: <defaults>
</compile_context>

<pallas_src>
import math
from functools import partial

import jax
import jax.numpy as jnp
from jax import lax
from jax.experimental import pallas as pl
from jax.experimental.pallas import tpu as pltpu


# ----------------------------------------------------------------------------
# Generation-aware scoped-VMEM limit
# ----------------------------------------------------------------------------
_VMEM_LIMIT_CACHE = None


def _vmem_limit_bytes():
    """~75% of physical VMEM, capped at 96 MiB.

    v5e/v6e (128 MiB physical) -> 96 MiB; v7x (64 MiB physical) -> 48 MiB.
    Falls back to a conservative 48 MiB if the hardware query is unavailable.
    """
    global _VMEM_LIMIT_CACHE
    if _VMEM_LIMIT_CACHE is None:
        limit = 48 * 1024 * 1024
        try:
            cap = int(pltpu.get_tpu_info().vmem_capacity_bytes)
            limit = min((cap * 3) // 4, 96 * 1024 * 1024)
        except Exception:
            pass  # older jax / query unavailable: keep the safe default
        _VMEM_LIMIT_CACHE = limit
    return _VMEM_LIMIT_CACHE


def _pick_q_tile(t):
    """Largest query tile <= 512 that divides T (falls back to T)."""
    for tq in (512, 256, 128):
        if t % tq == 0:
            return tq
    return t


# ----------------------------------------------------------------------------
# Pallas kernels
# ----------------------------------------------------------------------------
def _qkv_proj_kernel(x_ref, wq_ref, wk_ref, wv_ref, bq_ref, bk_ref, bv_ref,
                     q_ref, k_ref, v_ref):
    # x: (tile_n, E) streamed once; weights (E, E) pre-transposed & resident.
    x = x_ref[...]
    q_ref[...] = (jnp.dot(x, wq_ref[...], preferred_element_type=jnp.float32)
                  + bq_ref[...]).astype(q_ref.dtype)
    k_ref[...] = (jnp.dot(x, wk_ref[...], preferred_element_type=jnp.float32)
                  + bk_ref[...]).astype(k_ref.dtype)
    v_ref[...] = (jnp.dot(x, wv_ref[...], preferred_element_type=jnp.float32)
                  + bv_ref[...]).astype(v_ref.dtype)


def _linear_kernel(x_ref, w_ref, b_ref, o_ref):
    # x: (tile_n, in), w: (in, out) pre-transposed, b: (1, out)
    y = jnp.dot(x_ref[...], w_ref[...], preferred_element_type=jnp.float32)
    o_ref[...] = (y + b_ref[...]).astype(o_ref.dtype)


def _attention_kernel(q_ref, k_ref, v_ref, o_ref, w_ref, *, num_heads, head_dim):
    """One (batch, query-tile) step over ALL heads.

    q_ref: (1, tq, E)   (q part already scaled via folded wq/bq)
    k_ref: (1, S,  E)   v_ref: (1, S, E)
    o_ref: (1, tq, E)   w_ref: (1, tq, S)  (head-averaged probs, f32)

    Heads are processed by a static unroll; each head reads only its (., Dh)
    ref slices and stores its result directly, so no H x (tq, Dh) partials or
    lane concatenate stay live.  (A single H-batched dot_general would lower to
    the same per-head MXU loop since the contraction depth is Dh anyway.)
    """
    inv_h = 1.0 / num_heads
    for h in range(num_heads):               # static unroll
        lo = h * head_dim                    # static, head_dim-aligned offset
        q = q_ref[0, :, lo:lo + head_dim]    # (tq, Dh) ref-slice load
        k = k_ref[0, :, lo:lo + head_dim]    # (S,  Dh)
        v = v_ref[0, :, lo:lo + head_dim]    # (S,  Dh)

        # scores: contract Dh of q and k directly (no materialized k.T)
        s = lax.dot_general(
            q, k, dimension_numbers=(((1,), (1,)), ((), ())),
            preferred_element_type=jnp.float32)                   # (tq, S) f32

        # float32 softmax over the key axis (matches fairseq_utils.softmax)
        m = jnp.max(s, axis=-1, keepdims=True)
        e = jnp.exp(s - m)
        d = jnp.sum(e, axis=-1, keepdims=True)
        r = pl.reciprocal(d, approx=True)     # EUP slot, not a VALU divide
        r = r * (2.0 - d * r)                 # one Newton step -> ~f32 exact
        p = e * r                             # (tq, S) f32

        # per-head P.V in the activation dtype (bf16 MXU when inputs are bf16)
        attn_h = jnp.dot(p.astype(v.dtype), v,
                         preferred_element_type=jnp.float32)      # (tq, Dh)
        o_ref[0, :, lo:lo + head_dim] = attn_h.astype(o_ref.dtype)

        # head mean of the attention probabilities, accumulated in-place
        ph = p * inv_h
        if h == 0:
            w_ref[0, :, :] = ph.astype(w_ref.dtype)
        else:
            w_ref[0, :, :] = w_ref[0, :, :] + ph.astype(w_ref.dtype)


# ----------------------------------------------------------------------------
# Wrappers around pallas_call
# ----------------------------------------------------------------------------
def pallas_qkv_proj(x, wq_t, wk_t, wv_t, bq, bk, bv, *, row_block=None):
    """q,k,v = x @ w*_t + b*   (x: (N, E); weights pre-transposed (E, E))."""
    n, in_dim = x.shape
    out_dim = wq_t.shape[1]
    if row_block is None:
        row_block = 256 if x.dtype == jnp.float32 else 512
    tile_n = n if n <= row_block else row_block
    grid = (pl.cdiv(n, tile_n),)

    x_spec = pl.BlockSpec((tile_n, in_dim), lambda i: (i, 0))
    w_spec = pl.BlockSpec((in_dim, out_dim), lambda i: (0, 0))   # resident
    b_spec = pl.BlockSpec((1, out_dim), lambda i: (0, 0))        # resident
    o_spec = pl.BlockSpec((tile_n, out_dim), lambda i: (i, 0))

    return pl.pallas_call(
        _qkv_proj_kernel,
        out_shape=(jax.ShapeDtypeStruct((n, out_dim), x.dtype),
                   jax.ShapeDtypeStruct((n, out_dim), x.dtype),
                   jax.ShapeDtypeStruct((n, out_dim), x.dtype)),
        grid=grid,
        in_specs=[x_spec, w_spec, w_spec, w_spec, b_spec, b_spec, b_spec],
        out_specs=(o_spec, o_spec, o_spec),
        compiler_params=pltpu.CompilerParams(
            dimension_semantics=("parallel",),
            vmem_limit_bytes=_vmem_limit_bytes(),
        ),
    )(x, wq_t, wk_t, wv_t,
      bq.reshape(1, out_dim), bk.reshape(1, out_dim), bv.reshape(1, out_dim))


def pallas_linear(x, w_t, b, *, row_block=None):
    """y = x @ w_t + b   (x: (N, in), w_t: (in, out) pre-transposed)."""
    n, in_dim = x.shape
    out_dim = w_t.shape[1]
    if row_block is None:
        row_block = 256 if x.dtype == jnp.float32 else 512
    tile_n = n if n <= row_block else row_block
    grid = (pl.cdiv(n, tile_n),)
    # TODO(synk): add K/N tiling with a VMEM f32 accumulator for embed_dim>=2048
    # (the resident (E, E) weight alone approaches v7x's VMEM budget there).
    return pl.pallas_call(
        _linear_kernel,
        out_shape=jax.ShapeDtypeStruct((n, out_dim), x.dtype),
        grid=grid,
        in_specs=[
            pl.BlockSpec((tile_n, in_dim), lambda i: (i, 0)),
            pl.BlockSpec((in_dim, out_dim), lambda i: (0, 0)),   # resident weight
            pl.BlockSpec((1, out_dim), lambda i: (0, 0)),        # resident bias
        ],
        out_specs=pl.BlockSpec((tile_n, out_dim), lambda i: (i, 0)),
        compiler_params=pltpu.CompilerParams(
            dimension_semantics=("parallel",),
            vmem_limit_bytes=_vmem_limit_bytes(),
        ),
    )(x, w_t, b.reshape(1, out_dim))


def pallas_attention(q, k, v, num_heads):
    """q, k, v: (B, T, E) with q pre-scaled.

    Returns (attn (B, T, E), head-averaged weights (B, T, S), f32)."""
    bsz, tgt_len, embed_dim = q.shape
    src_len = k.shape[1]
    head_dim = embed_dim // num_heads
    tq = _pick_q_tile(tgt_len)
    grid = (bsz, tgt_len // tq)               # qi is the fast axis -> K/V blocks
                                              # (constant over qi) are not re-DMAed
    kernel = partial(_attention_kernel, num_heads=num_heads, head_dim=head_dim)
    return pl.pallas_call(
        kernel,
        out_shape=(
            jax.ShapeDtypeStruct((bsz, tgt_len, embed_dim), q.dtype),
            jax.ShapeDtypeStruct((bsz, tgt_len, src_len), jnp.float32),
        ),
        grid=grid,
        in_specs=[
            pl.BlockSpec((1, tq, embed_dim), lambda b, qi: (b, qi, 0)),
            pl.BlockSpec((1, src_len, embed_dim), lambda b, qi: (b, 0, 0)),
            pl.BlockSpec((1, src_len, embed_dim), lambda b, qi: (b, 0, 0)),
        ],
        out_specs=(
            pl.BlockSpec((1, tq, embed_dim), lambda b, qi: (b, qi, 0)),
            pl.BlockSpec((1, tq, src_len), lambda b, qi: (b, qi, 0)),
        ),
        compiler_params=pltpu.CompilerParams(
            dimension_semantics=("parallel", "parallel"),   # megacore-shardable
            vmem_limit_bytes=_vmem_limit_bytes(),
        ),
    )(q, k, v)


# ----------------------------------------------------------------------------
# Parameter fusion (done ONCE): pre-transpose weights, fold in the q scaling
# ----------------------------------------------------------------------------
def fuse_params(params, num_heads):
    embed_dim = params["wq"].shape[0]
    head_dim = embed_dim // num_heads
    scaling = head_dim ** (-0.5)
    return {
        "wq_t": params["wq"].T * scaling,   # (E, E), scaling folded in
        "wk_t": params["wk"].T,
        "wv_t": params["wv"].T,
        "bq": params["bq"] * scaling,
        "bk": params["bk"],
        "bv": params["bv"],
        "wo_t": params["wo"].T,             # (E, E) pre-transposed
        "bo": params["bo"],
    }


# ----------------------------------------------------------------------------
# Module-equivalent forward
# ----------------------------------------------------------------------------
def qmha_forward(query, fused, num_heads):
    """query: (tgt_len, bsz, embed_dim). Returns (attn, avg_attn_weights)."""
    tgt_len, bsz, embed_dim = query.shape

    # single layout change so each batch element is a contiguous row block
    x_bt = jnp.transpose(query, (1, 0, 2)).reshape(bsz * tgt_len, embed_dim)

    # fused (and pre-scaled) Q/K/V projection: x streamed from HBM once
    q, k, v = pallas_qkv_proj(x_bt, fused["wq_t"], fused["wk_t"], fused["wv_t"],
                              fused["bq"], fused["bk"], fused["bv"])
    q = q.reshape(bsz, tgt_len, embed_dim)
    k = k.reshape(bsz, tgt_len, embed_dim)
    v = v.reshape(bsz, tgt_len, embed_dim)

    # all heads per (batch, query-tile) step; head-mean of weights in-kernel
    attn_bt, attn_weights = pallas_attention(q, k, v, num_heads)

    # output projection on the merged, lane-dense (B*T, E) activations
    out = pallas_linear(attn_bt.reshape(bsz * tgt_len, embed_dim),
                        fused["wo_t"], fused["bo"])
    attn = jnp.transpose(out.reshape(bsz, tgt_len, embed_dim), (1, 0, 2))  # (T,B,E)

    # need_weights=True, need_head_weights=False -> (bsz, tgt_len, src_len)
    return attn, attn_weights


# ----------------------------------------------------------------------------
# Deterministic parameter init (mirrors reset_parameters shapes & scales)
# ----------------------------------------------------------------------------
def xavier_uniform(key, shape, gain=1.0):
    fan_out, fan_in = shape
    bound = gain * math.sqrt(6.0 / (fan_in + fan_out))
    return jax.random.uniform(key, shape, jnp.float32, -bound, bound)


def init_params(key, embed_dim):
    ks = jax.random.split(key, 8)
    g = 1.0 / math.sqrt(2.0)  # qkv_same_dim -> gain = 1/sqrt(2)
    lin_bound = 1.0 / math.sqrt(embed_dim)
    return {
        "wq": xavier_uniform(ks[0], (embed_dim, embed_dim), g),
        "wk": xavier_uniform(ks[1], (embed_dim, embed_dim), g),
        "wv": xavier_uniform(ks[2], (embed_dim, embed_dim), g),
        "wo": xavier_uniform(ks[3], (embed_dim, embed_dim), 1.0),
        "bq": jax.random.uniform(ks[4], (embed_dim,), jnp.float32, -lin_bound, lin_bound),
        "bk": jax.random.uniform(ks[5], (embed_dim,), jnp.float32, -lin_bound, lin_bound),
        "bv": jax.random.uniform(ks[6], (embed_dim,), jnp.float32, -lin_bound, lin_bound),
        "bo": jnp.zeros((embed_dim,), jnp.float32),  # out_proj bias init'd to 0
    }


# ----------------------------------------------------------------------------
# Pure-JAX reference (unfused) for a sanity check
# ----------------------------------------------------------------------------
def qmha_reference(query, params, num_heads):
    tgt_len, bsz, embed_dim = query.shape
    head_dim = embed_dim // num_heads
    scaling = head_dim ** (-0.5)
    x2d = query.reshape(tgt_len * bsz, embed_dim)
    q = x2d @ params["wq"].T + params["bq"]
    k = x2d @ params["wk"].T + params["bk"]
    v = x2d @ params["wv"].T + params["bv"]
    q = q * scaling

    def split_heads(t):
        return t.reshape(tgt_len, bsz * num_heads, head_dim).transpose(1, 0, 2)

    qh, kh, vh = split_heads(q), split_heads(k), split_heads(v)
    s = jnp.einsum("btd,bsd->bts", qh, kh)
    p = jax.nn.softmax(s, axis=-1)
    a = jnp.einsum("bts,bsd->btd", p, vh)
    a = a.transpose(1, 0, 2).reshape(tgt_len, bsz, embed_dim)
    a = a @ params["wo"].T + params["bo"]
    w = jnp.mean(p.reshape(bsz, num_heads, tgt_len, tgt_len), axis=1)
    return a, w


if __name__ == "__main__":
    # small but layout-meaningful shapes: E is a lane multiple, Dh = 32
    tgt_len, bsz, embed_dim, num_heads = 8, 2, 128, 4

    key = jax.random.PRNGKey(0)
    k_x, k_p = jax.random.split(key)
    query = jax.random.normal(k_x, (tgt_len, bsz, embed_dim), jnp.float32)
    params = init_params(k_p, embed_dim)
    fused = fuse_params(params, num_heads)    # one-time transpose + scaling fold

    fwd = jax.jit(qmha_forward, static_argnums=2)
    attn, attn_weights = fwd(query, fused, num_heads)
    jax.block_until_ready((attn, attn_weights))

    # sanity check against a pure-JAX reference
    ref_attn, ref_w = qmha_reference(query, params, num_heads)
    assert attn.shape == (tgt_len, bsz, embed_dim)
    assert attn_weights.shape == (bsz, tgt_len, tgt_len)
    assert jnp.allclose(attn, ref_attn, atol=1e-3, rtol=1e-3)
    assert jnp.allclose(attn_weights, ref_w, atol=1e-3, rtol=1e-3)

    print("KERNEL_OK")
</pallas_src>

<mosaic_0001>
module attributes {stable_mosaic.version = 11 : i64} {
  func.func @_linear_kernel(%arg0: i32, %arg1: memref<16x128xf32, #tpu.memory_space<vmem>>, %arg2: memref<128x128xf32, #tpu.memory_space<vmem>>, %arg3: memref<1x128xf32, #tpu.memory_space<vmem>>, %arg4: memref<16x128xf32, #tpu.memory_space<vmem>>) attributes {dimension_semantics = [#tpu.dimension_semantics<parallel>], iteration_bounds = array<i64: 1>, scalar_prefetch = 0 : i64, scratch_operands = 0 : i64, tpu.core_type = #tpu.core_type<tc>, window_params = [{transform_indices = @transform_0, window_bounds = array<i64: 16, 128>}, {pipeline_mode = #tpu.pipeline_mode<synchronous>, transform_indices = @transform_1, window_bounds = array<i64: 128, 128>}, {pipeline_mode = #tpu.pipeline_mode<synchronous>, transform_indices = @transform_2, window_bounds = array<i64: 1, 128>}, {transform_indices = @transform_3, window_bounds = array<i64: 16, 128>}]} {
    %c0 = arith.constant 0 : index
    %c0_0 = arith.constant 0 : index
    %0 = vector.load %arg1[%c0, %c0_0] : memref<16x128xf32, #tpu.memory_space<vmem>>, vector<16x128xf32>
    %c0_1 = arith.constant 0 : index
    %c0_2 = arith.constant 0 : index
    %1 = vector.load %arg2[%c0_1, %c0_2] : memref<128x128xf32, #tpu.memory_space<vmem>>, vector<128x128xf32>
    %cst = arith.constant dense<0.000000e+00> : vector<16x128xf32>
    %2 = tpu.matmul %0, %1, %cst {dimension_numbers = #tpu.dot_dimension_numbers<[1], [0], [0], [1], [0, 0, 1, 1], [], []>} : vector<16x128xf32>, vector<128x128xf32>, vector<16x128xf32> -> vector<16x128xf32>
    %c0_3 = arith.constant 0 : index
    %c0_4 = arith.constant 0 : index
    %3 = vector.load %arg3[%c0_3, %c0_4] : memref<1x128xf32, #tpu.memory_space<vmem>>, vector<1x128xf32>
    %4 = vector.broadcast %3 : vector<1x128xf32> to vector<16x128xf32>
    %5 = arith.addf %2, %4 : vector<16x128xf32>
    %c0_5 = arith.constant 0 : index
    %c0_6 = arith.constant 0 : index
    %6 = vector.load %arg4[%c0_5, %c0_6] : memref<16x128xf32, #tpu.memory_space<vmem>>, vector<16x128xf32>
    tpu.vector_store %arg4[%c0_5, %c0_6], %5 {strides = array<i32>} : memref<16x128xf32, #tpu.memory_space<vmem>>, vector<16x128xf32>,
    return
  }
  func.func @transform_0(%arg0: i32) -> (i32, i32) {
    %c0_i32 = arith.constant 0 : i32
    %c0_i32_0 = arith.constant 0 : i32
    return %arg0, %c0_i32 : i32, i32
  }
  func.func @transform_1(%arg0: i32) -> (i32, i32) {
    %c0_i32 = arith.constant 0 : i32
    %c0_i32_0 = arith.constant 0 : i32
    %c0_i32_1 = arith.constant 0 : i32
    return %c0_i32, %c0_i32_0 : i32, i32
  }
  func.func @transform_2(%arg0: i32) -> (i32, i32) {
    %c0_i32 = arith.constant 0 : i32
    %c0_i32_0 = arith.constant 0 : i32
    %c0_i32_1 = arith.constant 0 : i32
    return %c0_i32, %c0_i32_0 : i32, i32
  }
  func.func @transform_3(%arg0: i32) -> (i32, i32) {
    %c0_i32 = arith.constant 0 : i32
    %c0_i32_0 = arith.constant 0 : i32
    return %arg0, %c0_i32 : i32, i32
  }
}

module attributes {stable_mosaic.version = 11 : i64} {
  func.func @_qkv_proj_kernel(%arg0: i32, %arg1: memref<16x128xf32, #tpu.memory_space<vmem>>, %arg2: memref<128x128xf32, #tpu.memory_space<vmem>>, %arg3: memref<128x128xf32, #tpu.memory_space<vmem>>, %arg4: memref<128x128xf32, #tpu.memory_space<vmem>>, %arg5: memref<1x128xf32, #tpu.memory_space<vmem>>, %arg6: memref<1x128xf32, #tpu.memory_space<vmem>>, %arg7: memref<1x128xf32, #tpu.memory_space<vmem>>, %arg8: memref<16x128xf32, #tpu.memory_space<vmem>>, %arg9: memref<16x128xf32, #tpu.memory_space<vmem>>, %arg10: memref<16x128xf32, #tpu.memory_space<vmem>>) attributes {dimension_semantics = [#tpu.dimension_semantics<parallel>], iteration_bounds = array<i64: 1>, scalar_prefetch = 0 : i64, scratch_operands = 0 : i64, tpu.core_type = #tpu.core_type<tc>, window_params = [{transform_indices = @transform_0, window_bounds = array<i64: 16, 128>}, {pipeline_mode = #tpu.pipeline_mode<synchronous>, transform_indices = @transform_1, window_bounds = array<i64: 128, 128>}, {pipeline_mode = #tpu.pipeline_mode<synchronous>, transform_indices = @transform_2, window_bounds = array<i64: 128, 128>}, {pipeline_mode = #tpu.pipeline_mode<synchronous>, transform_indices = @transform_3, window_bounds = array<i64: 128, 128>}, {pipeline_mode = #tpu.pipeline_mode<synchronous>, transform_indices = @transform_4, window_bounds = array<i64: 1, 128>}, {pipeline_mode = #tpu.pipeline_mode<synchronous>, transform_indices = @transform_5, window_bounds = array<i64: 1, 128>}, {pipeline_mode = #tpu.pipeline_mode<synchronous>, transform_indices = @transform_6, window_bounds = array<i64: 1, 128>}, {transform_indices = @transform_7, window_bounds = array<i64: 16, 128>}, {transform_indices = @transform_8, window_bounds = array<i64: 16, 128>}, {transform_indices = @transform_9, window_bounds = array<i64: 16, 128>}]} {
    %c0 = arith.constant 0 : index
    %c0_0 = arith.constant 0 : index
    %0 = vector.load %arg1[%c0, %c0_0] : memref<16x128xf32, #tpu.memory_space<vmem>>, vector<16x128xf32>
    %c0_1 = arith.constant 0 : index
    %c0_2 = arith.constant 0 : index
    %1 = vector.load %arg2[%c0_1, %c0_2] : memref<128x128xf32, #tpu.memory_space<vmem>>, vector<128x128xf32>
    %cst = arith.constant dense<0.000000e+00> : vector<16x128xf32>
    %2 = tpu.matmul %0, %1, %cst {dimension_numbers = #tpu.dot_dimension_numbers<[1], [0], [0], [1], [0, 0, 1, 1], [], []>} : vector<16x128xf32>, vector<128x128xf32>, vector<16x128xf32> -> vector<16x128xf32>
    %c0_3 = arith.constant 0 : index
    %c0_4 = arith.constant 0 : index
    %3 = vector.load %arg5[%c0_3, %c0_4] : memref<1x128xf32, #tpu.memory_space<vmem>>, vector<1x128xf32>
    %4 = vector.broadcast %3 : vector<1x128xf32> to vector<16x128xf32>
    %5 = arith.addf %2, %4 : vector<16x128xf32>
    %c0_5 = arith.constant 0 : index
    %c0_6 = arith.constant 0 : index
    %6 = vector.load %arg8[%c0_5, %c0_6] : memref<16x128xf32, #tpu.memory_space<vmem>>, vector<16x128xf32>
    tpu.vector_store %arg8[%c0_5, %c0_6], %5 {strides = array<i32>} : memref<16x128xf32, #tpu.memory_space<vmem>>, vector<16x128xf32>,
    %c0_7 = arith.constant 0 : index
    %c0_8 = arith.constant 0 : index
    %7 = vector.load %arg3[%c0_7, %c0_8] : memref<128x128xf32, #tpu.memory_space<vmem>>, vector<128x128xf32>
    %cst_9 = arith.constant dense<0.000000e+00> : vector<16x128xf32>
    %8 = tpu.matmul %0, %7, %cst_9 {dimension_numbers = #tpu.dot_dimension_numbers<[1], [0], [0], [1], [0, 0, 1, 1], [], []>} : vector<16x128xf32>, vector<128x128xf32>, vector<16x128xf32> -> vector<16x128xf32>
    %c0_10 = arith.constant 0 : index
    %c0_11 = arith.constant 0 : index
    %9 = vector.load %arg6[%c0_10, %c0_11] : memref<1x128xf32, #tpu.memory_space<vmem>>, vector<1x128xf32>
    %10 = vector.broadcast %9 : vector<1x128xf32> to vector<16x128xf32>
    %11 = arith.addf %8, %10 : vector<16x128xf32>
    %c0_12 = arith.constant 0 : index
    %c0_13 = arith.constant 0 : index
    %12 = vector.load %arg9[%c0_12, %c0_13] : memref<16x128xf32, #tpu.memory_space<vmem>>, vector<16x128xf32>
    tpu.vector_store %arg9[%c0_12, %c0_13], %11 {strides = array<i32>} : memref<16x128xf32, #tpu.memory_space<vmem>>, vector<16x128xf32>,
    %c0_14 = arith.constant 0 : index
    %c0_15 = arith.constant 0 : index
    %13 = vector.load %arg4[%c0_14, %c0_15] : memref<128x128xf32, #tpu.memory_space<vmem>>, vector<128x128xf32>
    %cst_16 = arith.constant dense<0.000000e+00> : vector<16x128xf32>
    %14 = tpu.matmul %0, %13, %cst_16 {dimension_numbers = #tpu.dot_dimension_numbers<[1], [0], [0], [1], [0, 0, 1, 1], [], []>} : vector<16x128xf32>, vector<128x128xf32>, vector<16x128xf32> -> vector<16x128xf32>
    %c0_17 = arith.constant 0 : index
    %c0_18 = arith.constant 0 : index
    %15 = vector.load %arg7[%c0_17, %c0_18] : memref<1x128xf32, #tpu.memory_space<vmem>>, vector<1x128xf32>
    %16 = vector.broadcast %15 : vector<1x128xf32> to vector<16x128xf32>
    %17 = arith.addf %14, %16 : vector<16x128xf32>
    %c0_19 = arith.constant 0 : index
    %c0_20 = arith.constant 0 : index
    %18 = vector.load %arg10[%c0_19, %c0_20] : memref<16x128xf32, #tpu.memory_space<vmem>>, vector<16x128xf32>
    tpu.vector_store %arg10[%c0_19, %c0_20], %17 {strides = array<i32>} : memref<16x128xf32, #tpu.memory_space<vmem>>, vector<16x128xf32>,
    return
  }
  func.func @transform_0(%arg0: i32) -> (i32, i32) {
    %c0_i32 = arith.constant 0 : i32
    %c0_i32_0 = arith.constant 0 : i32
    return %arg0, %c0_i32 : i32, i32
  }
  func.func @transform_1(%arg0: i32) -> (i32, i32) {
    %c0_i32 = arith.constant 0 : i32
    %c0_i32_0 = arith.constant 0 : i32
    %c0_i32_1 = arith.constant 0 : i32
    return %c0_i32, %c0_i32_0 : i32, i32
  }
  func.func @transform_2(%arg0: i32) -> (i32, i32) {
    %c0_i32 = arith.constant 0 : i32
    %c0_i32_0 = arith.constant 0 : i32
    %c0_i32_1 = arith.constant 0 : i32
    return %c0_i32, %c0_i32_0 : i32, i32
  }
  func.func @transform_3(%arg0: i32) -> (i32, i32) {
    %c0_i32 = arith.constant 0 : i32
    %c0_i32_0 = arith.constant 0 : i32
    %c0_i32_1 = arith.constant 0 : i32
    return %c0_i32, %c0_i32_0 : i32, i32
  }
  func.func @transform_4(%arg0: i32) -> (i32, i32) {
    %c0_i32 = arith.constant 0 : i32
    %c0_i32_0 = arith.constant 0 : i32
    %c0_i32_1 = arith.constant 0 : i32
    return %c0_i32, %c0_i32_0 : i32, i32
  }
  func.func @transform_5(%arg0: i32) -> (i32, i32) {
    %c0_i32 = arith.constant 0 : i32
    %c0_i32_0 = arith.constant 0 : i32
    %c0_i32_1 = arith.constant 0 : i32
    return %c0_i32, %c0_i32_0 : i32, i32
  }
  func.func @transform_6(%arg0: i32) -> (i32, i32) {
    %c0_i32 = arith.constant 0 : i32
    %c0_i32_0 = arith.constant 0 : i32
    %c0_i32_1 = arith.constant 0 : i32
    return %c0_i32, %c0_i32_0 : i32, i32
  }
  func.func @transform_7(%arg0: i32) -> (i32, i32) {
    %c0_i32 = arith.constant 0 : i32
    %c0_i32_0 = arith.constant 0 : i32
    return %arg0, %c0_i32 : i32, i32
  }
  func.func @transform_8(%arg0: i32) -> (i32, i32) {
    %c0_i32 = arith.constant 0 : i32
    %c0_i32_0 = arith.constant 0 : i32
    return %arg0, %c0_i32 : i32, i32
  }
  func.func @transform_9(%arg0: i32) -> (i32, i32) {
    %c0_i32 = arith.constant 0 : i32
    %c0_i32_0 = arith.constant 0 : i32
    return %arg0, %c0_i32 : i32, i32
  }
}

module attributes {stable_mosaic.version = 11 : i64} {
  func.func @_attention_kernel(%arg0: i32, %arg1: i32, %arg2: memref<1x8x128xf32, #tpu.memory_space<vmem>>, %arg3: memref<1x8x128xf32, #tpu.memory_space<vmem>>, %arg4: memref<1x8x128xf32, #tpu.memory_space<vmem>>, %arg5: memref<1x8x128xf32, #tpu.memory_space<vmem>>, %arg6: memref<1x8x8xf32, #tpu.memory_space<vmem>>) attributes {dimension_semantics = [#tpu.dimension_semantics<parallel>, #tpu.dimension_semantics<parallel>], iteration_bounds = array<i64: 2, 1>, scalar_prefetch = 0 : i64, scratch_operands = 0 : i64, tpu.core_type = #tpu.core_type<tc>, window_params = [{transform_indices = @transform_0, window_bounds = array<i64: 1, 8, 128>}, {transform_indices = @transform_1, window_bounds = array<i64: 1, 8, 128>}, {transform_indices = @transform_2, window_bounds = array<i64: 1, 8, 128>}, {transform_indices = @transform_3, window_bounds = array<i64: 1, 8, 128>}, {transform_indices = @transform_4, window_bounds = array<i64: 1, 8, 8>}]} {
    %c0 = arith.constant 0 : index
    %c0_0 = arith.constant 0 : index
    %c0_1 = arith.constant 0 : index
    %0 = vector.load %arg2[%c0, %c0_0, %c0_1] : memref<1x8x128xf32, #tpu.memory_space<vmem>>, vector<1x8x32xf32>
    %1 = vector.shape_cast %0 : vector<1x8x32xf32> to vector<8x32xf32>
    %c0_2 = arith.constant 0 : index
    %c0_3 = arith.constant 0 : index
    %c0_4 = arith.constant 0 : index
    %2 = vector.load %arg3[%c0_2, %c0_3, %c0_4] : memref<1x8x128xf32, #tpu.memory_space<vmem>>, vector<1x8x32xf32>
    %3 = vector.shape_cast %2 : vector<1x8x32xf32> to vector<8x32xf32>
    %c0_5 = arith.constant 0 : index
    %c0_6 = arith.constant 0 : index
    %c0_7 = arith.constant 0 : index
    %4 = vector.load %arg4[%c0_5, %c0_6, %c0_7] : memref<1x8x128xf32, #tpu.memory_space<vmem>>, vector<1x8x32xf32>
    %5 = vector.shape_cast %4 : vector<1x8x32xf32> to vector<8x32xf32>
    %cst = arith.constant dense<0.000000e+00> : vector<8x8xf32>
    %6 = tpu.matmul %1, %3, %cst {dimension_numbers = #tpu.dot_dimension_numbers<[1], [1], [0], [0], [0, 0, 1, 0], [], []>} : vector<8x32xf32>, vector<8x32xf32>, vector<8x8xf32> -> vector<8x8xf32>
    %cst_8 = arith.constant dense<0xFF800000> : vector<8xf32>
    %7 = vector.multi_reduction <maximumf>, %6, %cst_8 [1] : vector<8x8xf32> to vector<8xf32>
    %8 = vector.shape_cast %7 : vector<8xf32> to vector<8x1xf32>
    %9 = vector.broadcast %8 : vector<8x1xf32> to vector<8x8xf32>
    %10 = arith.subf %6, %9 : vector<8x8xf32>
    %11 = math.exp %10 : vector<8x8xf32>
    %cst_9 = arith.constant dense<0.000000e+00> : vector<8xf32>
    %12 = vector.multi_reduction <add>, %11, %cst_9 [1] : vector<8x8xf32> to vector<8xf32>
    %13 = vector.shape_cast %12 : vector<8xf32> to vector<8x1xf32>
    %14 = tpu.reciprocal %13 {approx = true} : vector<8x1xf32> -> vector<8x1xf32>
    %15 = arith.mulf %13, %14 : vector<8x1xf32>
    %cst_10 = arith.constant 2.000000e+00 : f32
    %16 = vector.broadcast %cst_10 : f32 to vector<8x1xf32>
    %17 = arith.subf %16, %15 : vector<8x1xf32>
    %18 = arith.mulf %14, %17 : vector<8x1xf32>
    %19 = vector.broadcast %18 : vector<8x1xf32> to vector<8x8xf32>
    %20 = arith.mulf %11, %19 : vector<8x8xf32>
    %cst_11 = arith.constant dense<0.000000e+00> : vector<8x32xf32>
    %21 = tpu.matmul %20, %5, %cst_11 {dimension_numbers = #tpu.dot_dimension_numbers<[1], [0], [0], [1], [0, 0, 1, 1], [], []>} : vector<8x8xf32>, vector<8x32xf32>, vector<8x32xf32> -> vector<8x32xf32>
    %c0_12 = arith.constant 0 : index
    %c0_13 = arith.constant 0 : index
    %c0_14 = arith.constant 0 : index
    %22 = vector.load %arg5[%c0_12, %c0_13, %c0_14] : memref<1x8x128xf32, #tpu.memory_space<vmem>>, vector<1x8x32xf32>
    %23 = vector.shape_cast %22 : vector<1x8x32xf32> to vector<8x32xf32>
    %24 = vector.shape_cast %21 : vector<8x32xf32> to vector<1x8x32xf32>
    tpu.vector_store %arg5[%c0_12, %c0_13, %c0_14], %24 {strides = array<i32>} : memref<1x8x128xf32, #tpu.memory_space<vmem>>, vector<1x8x32xf32>,
    %cst_15 = arith.constant 2.500000e-01 : f32
    %25 = vector.broadcast %cst_15 : f32 to vector<8x8xf32>
    %26 = arith.mulf %20, %25 : vector<8x8xf32>
    %c0_16 = arith.constant 0 : index
    %c0_17 = arith.constant 0 : index
    %c0_18 = arith.constant 0 : index
    %27 = vector.load %arg6[%c0_16, %c0_17, %c0_18] : memref<1x8x8xf32, #tpu.memory_space<vmem>>, vector<1x8x8xf32>
    %28 = vector.shape_cast %27 : vector<1x8x8xf32> to vector<8x8xf32>
    %29 = vector.shape_cast %26 : vector<8x8xf32> to vector<1x8x8xf32>
    tpu.vector_store %arg6[%c0_16, %c0_17, %c0_18], %29 {strides = array<i32>} : memref<1x8x8xf32, #tpu.memory_space<vmem>>, vector<1x8x8xf32>,
    %c0_19 = arith.constant 0 : index
    %c0_20 = arith.constant 0 : index
    %c32 = arith.constant 32 : index
    %30 = vector.load %arg2[%c0_19, %c0_20, %c32] : memref<1x8x128xf32, #tpu.memory_space<vmem>>, vector<1x8x32xf32>
    %31 = vector.shape_cast %30 : vector<1x8x32xf32> to vector<8x32xf32>
    %c0_21 = arith.constant 0 : index
    %c0_22 = arith.constant 0 : index
    %c32_23 = arith.constant 32 : index
    %32 = vector.load %arg3[%c0_21, %c0_22, %c32_23] : memref<1x8x128xf32, #tpu.memory_space<vmem>>, vector<1x8x32xf32>
    %33 = vector.shape_cast %32 : vector<1x8x32xf32> to vector<8x32xf32>
    %c0_24 = arith.constant 0 : index
    %c0_25 = arith.constant 0 : index
    %c32_26 = arith.constant 32 : index
    %34 = vector.load %arg4[%c0_24, %c0_25, %c32_26] : memref<1x8x128xf32, #tpu.memory_space<vmem>>, vector<1x8x32xf32>
    %35 = vector.shape_cast %34 : vector<1x8x32xf32> to vector<8x32xf32>
    %cst_27 = arith.constant dense<0.000000e+00> : vector<8x8xf32>
    %36 = tpu.matmul %31, %33, %cst_27 {dimension_numbers = #tpu.dot_dimension_numbers<[1], [1], [0], [0], [0, 0, 1, 0], [], []>} : vector<8x32xf32>, vector<8x32xf32>, vector<8x8xf32> -> vector<8x8xf32>
    %cst_28 = arith.constant dense<0xFF800000> : vector<8xf32>
    %37 = vector.multi_reduction <maximumf>, %36, %cst_28 [1] : vector<8x8xf32> to vector<8xf32>
    %38 = vector.shape_cast %37 : vector<8xf32> to vector<8x1xf32>
    %39 = vector.broadcast %38 : vector<8x1xf32> to vector<8x8xf32>
    %40 = arith.subf %36, %39 : vector<8x8xf32>
    %41 = math.exp %40 : vector<8x8xf32>
    %cst_29 = arith.constant dense<0.000000e+00> : vector<8xf32>
    %42 = vector.multi_reduction <add>, %41, %cst_29 [1] : vector<8x8xf32> to vector<8xf32>
    %43 = vector.shape_cast %42 : vector<8xf32> to vector<8x1xf32>
    %44 = tpu.reciprocal %43 {approx = true} : vector<8x1xf32> -> vector<8x1xf32>
    %45 = arith.mulf %43, %44 : vector<8x1xf32>
    %cst_30 = arith.constant 2.000000e+00 : f32
    %46 = vector.broadcast %cst_30 : f32 to vector<8x1xf32>
    %47 = arith.subf %46, %45 : vector<8x1xf32>
    %48 = arith.mulf %44, %47 : vector<8x1xf32>
    %49 = vector.broadcast %48 : vector<8x1xf32> to vector<8x8xf32>
    %50 = arith.mulf %41, %49 : vector<8x8xf32>
    %cst_31 = arith.constant dense<0.000000e+00> : vector<8x32xf32>
    %51 = tpu.matmul %50, %35, %cst_31 {dimension_numbers = #tpu.dot_dimension_numbers<[1], [0], [0], [1], [0, 0, 1, 1], [], []>} : vector<8x8xf32>, vector<8x32xf32>, vector<8x32xf32> -> vector<8x32xf32>
    %c0_32 = arith.constant 0 : index
    %c0_33 = arith.constant 0 : index
    %c32_34 = arith.constant 32 : index
    %52 = vector.load %arg5[%c0_32, %c0_33, %c32_34] : memref<1x8x128xf32, #tpu.memory_space<vmem>>, vector<1x8x32xf32>
    %53 = vector.shape_cast %52 : vector<1x8x32xf32> to vector<8x32xf32>
    %54 = vector.shape_cast %51 : vector<8x32xf32> to vector<1x8x32xf32>
    tpu.vector_store %arg5[%c0_32, %c0_33, %c32_34], %54 {strides = array<i32>} : memref<1x8x128xf32, #tpu.memory_space<vmem>>, vector<1x8x32xf32>,
    %cst_35 = arith.constant 2.500000e-01 : f32
    %55 = vector.broadcast %cst_35 : f32 to vector<8x8xf32>
    %56 = arith.mulf %50, %55 : vector<8x8xf32>
    %c0_36 = arith.constant 0 : index
    %c0_37 = arith.constant 0 : index
    %c0_38 = arith.constant 0 : index
    %57 = vector.load %arg6[%c0_36, %c0_37, %c0_38] : memref<1x8x8xf32, #tpu.memory_space<vmem>>, vector<1x8x8xf32>
    %58 = vector.shape_cast %57 : vector<1x8x8xf32> to vector<8x8xf32>
    %59 = arith.addf %58, %56 : vector<8x8xf32>
    %c0_39 = arith.constant 0 : index
    %c0_40 = arith.constant 0 : index
    %c0_41 = arith.constant 0 : index
    %60 = vector.load %arg6[%c0_39, %c0_40, %c0_41] : memref<1x8x8xf32, #tpu.memory_space<vmem>>, vector<1x8x8xf32>
    %61 = vector.shape_cast %60 : vector<1x8x8xf32> to vector<8x8xf32>
    %62 = vector.shape_cast %59 : vector<8x8xf32> to vector<1x8x8xf32>
    tpu.vector_store %arg6[%c0_39, %c0_40, %c0_41], %62 {strides = array<i32>} : memref<1x8x8xf32, #tpu.memory_space<vmem>>, vector<1x8x8xf32>,
    %c0_42 = arith.constant 0 : index
    %c0_43 = arith.constant 0 : index
    %c64 = arith.constant 64 : index
    %63 = vector.load %arg2[%c0_42, %c0_43, %c64] : memref<1x8x128xf32, #tpu.memory_space<vmem>>, vector<1x8x32xf32>
    %64 = vector.shape_cast %63 : vector<1x8x32xf32> to vector<8x32xf32>
    %c0_44 = arith.constant 0 : index
    %c0_45 = arith.constant 0 : index
    %c64_46 = arith.constant 64 : index
    %65 = vector.load %arg3[%c0_44, %c0_45, %c64_46] : memref<1x8x128xf32, #tpu.memory_space<vmem>>, vector<1x8x32xf32>
    %66 = vector.shape_cast %65 : vector<1x8x32xf32> to vector<8x32xf32>
    %c0_47 = arith.constant 0 : index
    %c0_48 = arith.constant 0 : index
    %c64_49 = arith.constant 64 : index
    %67 = vector.load %arg4[%c0_47, %c0_48, %c64_49] : memref<1x8x128xf32, #tpu.memory_space<vmem>>, vector<1x8x32xf32>
    %68 = vector.shape_cast %67 : vector<1x8x32xf32> to vector<8x32xf32>
    %cst_50 = arith.constant dense<0.000000e+00> : vector<8x8xf32>
    %69 = tpu.matmul %64, %66, %cst_50 {dimension_numbers = #tpu.dot_dimension_numbers<[1], [1], [0], [0], [0, 0, 1, 0], [], []>} : vector<8x32xf32>, vector<8x32xf32>, vector<8x8xf32> -> vector<8x8xf32>
    %cst_51 = arith.constant dense<0xFF800000> : vector<8xf32>
    %70 = vector.multi_reduction <maximumf>, %69, %cst_51 [1] : vector<8x8xf32> to vector<8xf32>
    %71 = vector.shape_cast %70 : vector<8xf32> to vector<8x1xf32>
    %72 = vector.broadcast %71 : vector<8x1xf32> to vector<8x8xf32>
    %73 = arith.subf %69, %72 : vector<8x8xf32>
    %74 = math.exp %73 : vector<8x8xf32>
    %cst_52 = arith.constant dense<0.000000e+00> : vector<8xf32>
    %75 = vector.multi_reduction <add>, %74, %cst_52 [1] : vector<8x8xf32> to vector<8xf32>
    %76 = vector.shape_cast %75 : vector<8xf32> to vector<8x1xf32>
    %77 = tpu.reciprocal %76 {approx = true} : vector<8x1xf32> -> vector<8x1xf32>
    %78 = arith.mulf %76, %77 : vector<8x1xf32>
    %cst_53 = arith.constant 2.000000e+00 : f32
    %79 = vector.broadcast %cst_53 : f32 to vector<8x1xf32>
    %80 = arith.subf %79, %78 : vector<8x1xf32>
    %81 = arith.mulf %77, %80 : vector<8x1xf32>
    %82 = vector.broadcast %81 : vector<8x1xf32> to vector<8x8xf32>
    %83 = arith.mulf %74, %82 : vector<8x8xf32>
    %cst_54 = arith.constant dense<0.000000e+00> : vector<8x32xf32>
    %84 = tpu.matmul %83, %68, %cst_54 {dimension_numbers = #tpu.dot_dimension_numbers<[1], [0], [0], [1], [0, 0, 1, 1], [], []>} : vector<8x8xf32>, vector<8x32xf32>, vector<8x32xf32> -> vector<8x32xf32>
    %c0_55 = arith.constant 0 : index
    %c0_56 = arith.constant 0 : index
    %c64_57 = arith.constant 64 : index
    %85 = vector.load %arg5[%c0_55, %c0_56, %c64_57] : memref<1x8x128xf32, #tpu.memory_space<vmem>>, vector<1x8x32xf32>
    %86 = vector.shape_cast %85 : vector<1x8x32xf32> to vector<8x32xf32>
    %87 = vector.shape_cast %84 : vector<8x32xf32> to vector<1x8x32xf32>
    tpu.vector_store %arg5[%c0_55, %c0_56, %c64_57], %87 {strides = array<i32>} : memref<1x8x128xf32, #tpu.memory_space<vmem>>, vector<1x8x32xf32>,
    %cst_58 = arith.constant 2.500000e-01 : f32
    %88 = vector.broadcast %cst_58 : f32 to vector<8x8xf32>
    %89 = arith.mulf %83, %88 : vector<8x8xf32>
    %c0_59 = arith.constant 0 : index
    %c0_60 = arith.constant 0 : index
    %c0_61 = arith.constant 0 : index
    %90 = vector.load %arg6[%c0_59, %c0_60, %c0_61] : memref<1x8x8xf32, #tpu.memory_space<vmem>>, vector<1x8x8xf32>
    %91 = vector.shape_cast %90 : vector<1x8x8xf32> to vector<8x8xf32>
    %92 = arith.addf %91, %89 : vector<8x8xf32>
    %c0_62 = arith.constant 0 : index
    %c0_63 = arith.constant 0 : index
    %c0_64 = arith.constant 0 : index
    %93 = vector.load %arg6[%c0_62, %c0_63, %c0_64] : memref<1x8x8xf32, #tpu.memory_space<vmem>>, vector<1x8x8xf32>
    %94 = vector.shape_cast %93 : vector<1x8x8xf32> to vector<8x8xf32>
    %95 = vector.shape_cast %92 : vector<8x8xf32> to vector<1x8x8xf32>
    tpu.vector_store %arg6[%c0_62, %c0_63, %c0_64], %95 {strides = array<i32>} : memref<1x8x8xf32, #tpu.memory_space<vmem>>, vector<1x8x8xf32>,
    %c0_65 = arith.constant 0 : index
    %c0_66 = arith.constant 0 : index
    %c96 = arith.constant 96 : index
    %96 = vector.load %arg2[%c0_65, %c0_66, %c96] : memref<1x8x128xf32, #tpu.memory_space<vmem>>, vector<1x8x32xf32>
    %97 = vector.shape_cast %96 : vector<1x8x32xf32> to vector<8x32xf32>
    %c0_67 = arith.constant 0 : index
    %c0_68 = arith.constant 0 : index
    %c96_69 = arith.constant 96 : index
    %98 = vector.load %arg3[%c0_67, %c0_68, %c96_69] : memref<1x8x128xf32, #tpu.memory_space<vmem>>, vector<1x8x32xf32>
    %99 = vector.shape_cast %98 : vector<1x8x32xf32> to vector<8x32xf32>
    %c0_70 = arith.constant 0 : index
    %c0_71 = arith.constant 0 : index
    %c96_72 = arith.constant 96 : index
    %100 = vector.load %arg4[%c0_70, %c0_71, %c96_72] : memref<1x8x128xf32, #tpu.memory_space<vmem>>, vector<1x8x32xf32>
    %101 = vector.shape_cast %100 : vector<1x8x32xf32> to vector<8x32xf32>
    %cst_73 = arith.constant dense<0.000000e+00> : vector<8x8xf32>
    %102 = tpu.matmul %97, %99, %cst_73 {dimension_numbers = #tpu.dot_dimension_numbers<[1], [1], [0], [0], [0, 0, 1, 0], [], []>} : vector<8x32xf32>, vector<8x32xf32>, vector<8x8xf32> -> vector<8x8xf32>
    %cst_74 = arith.constant dense<0xFF800000> : vector<8xf32>
    %103 = vector.multi_reduction <maximumf>, %102, %cst_74 [1] : vector<8x8xf32> to vector<8xf32>
    %104 = vector.shape_cast %103 : vector<8xf32> to vector<8x1xf32>
    %105 = vector.broadcast %104 : vector<8x1xf32> to vector<8x8xf32>
    %106 = arith.subf %102, %105 : vector<8x8xf32>
    %107 = math.exp %106 : vector<8x8xf32>
    %cst_75 = arith.constant dense<0.000000e+00> : vector<8xf32>
    %108 = vector.multi_reduction <add>, %107, %cst_75 [1] : vector<8x8xf32> to vector<8xf32>
    %109 = vector.shape_cast %108 : vector<8xf32> to vector<8x1xf32>
    %110 = tpu.reciprocal %109 {approx = true} : vector<8x1xf32> -> vector<8x1xf32>
    %111 = arith.mulf %109, %110 : vector<8x1xf32>
    %cst_76 = arith.constant 2.000000e+00 : f32
    %112 = vector.broadcast %cst_76 : f32 to vector<8x1xf32>
    %113 = arith.subf %112, %111 : vector<8x1xf32>
    %114 = arith.mulf %110, %113 : vector<8x1xf32>
    %115 = vector.broadcast %114 : vector<8x1xf32> to vector<8x8xf32>
    %116 = arith.mulf %107, %115 : vector<8x8xf32>
    %cst_77 = arith.constant dense<0.000000e+00> : vector<8x32xf32>
    %117 = tpu.matmul %116, %101, %cst_77 {dimension_numbers = #tpu.dot_dimension_numbers<[1], [0], [0], [1], [0, 0, 1, 1], [], []>} : vector<8x8xf32>, vector<8x32xf32>, vector<8x32xf32> -> vector<8x32xf32>
    %c0_78 = arith.constant 0 : index
    %c0_79 = arith.constant 0 : index
    %c96_80 = arith.constant 96 : index
    %118 = vector.load %arg5[%c0_78, %c0_79, %c96_80] : memref<1x8x128xf32, #tpu.memory_space<vmem>>, vector<1x8x32xf32>
    %119 = vector.shape_cast %118 : vector<1x8x32xf32> to vector<8x32xf32>
    %120 = vector.shape_cast %117 : vector<8x32xf32> to vector<1x8x32xf32>
    tpu.vector_store %arg5[%c0_78, %c0_79, %c96_80], %120 {strides = array<i32>} : memref<1x8x128xf32, #tpu.memory_space<vmem>>, vector<1x8x32xf32>,
    %cst_81 = arith.constant 2.500000e-01 : f32
    %121 = vector.broadcast %cst_81 : f32 to vector<8x8xf32>
    %122 = arith.mulf %116, %121 : vector<8x8xf32>
    %c0_82 = arith.constant 0 : index
    %c0_83 = arith.constant 0 : index
    %c0_84 = arith.constant 0 : index
    %123 = vector.load %arg6[%c0_82, %c0_83, %c0_84] : memref<1x8x8xf32, #tpu.memory_space<vmem>>, vector<1x8x8xf32>
    %124 = vector.shape_cast %123 : vector<1x8x8xf32> to vector<8x8xf32>
    %125 = arith.addf %124, %122 : vector<8x8xf32>
    %c0_85 = arith.constant 0 : index
    %c0_86 = arith.constant 0 : index
    %c0_87 = arith.constant 0 : index
    %126 = vector.load %arg6[%c0_85, %c0_86, %c0_87] : memref<1x8x8xf32, #tpu.memory_space<vmem>>, vector<1x8x8xf32>
    %127 = vector.shape_cast %126 : vector<1x8x8xf32> to vector<8x8xf32>
    %128 = vector.shape_cast %125 : vector<8x8xf32> to vector<1x8x8xf32>
    tpu.vector_store %arg6[%c0_85, %c0_86, %c0_87], %128 {strides = array<i32>} : memref<1x8x8xf32, #tpu.memory_space<vmem>>, vector<1x8x8xf32>,
    return
  }
  func.func @transform_0(%arg0: i32, %arg1: i32) -> (i32, i32, i32) {
    %c0_i32 = arith.constant 0 : i32
    %c0_i32_0 = arith.constant 0 : i32
    return %arg0, %arg1, %c0_i32 : i32, i32, i32
  }
  func.func @transform_1(%arg0: i32, %arg1: i32) -> (i32, i32, i32) {
    %c0_i32 = arith.constant 0 : i32
    %c0_i32_0 = arith.constant 0 : i32
    %c0_i32_1 = arith.constant 0 : i32
    return %arg0, %c0_i32, %c0_i32_0 : i32, i32, i32
  }
  func.func @transform_2(%arg0: i32, %arg1: i32) -> (i32, i32, i32) {
    %c0_i32 = arith.constant 0 : i32
    %c0_i32_0 = arith.constant 0 : i32
    %c0_i32_1 = arith.constant 0 : i32
    return %arg0, %c0_i32, %c0_i32_0 : i32, i32, i32
  }
  func.func @transform_3(%arg0: i32, %arg1: i32) -> (i32, i32, i32) {
    %c0_i32 = arith.constant 0 : i32
    %c0_i32_0 = arith.constant 0 : i32
    return %arg0, %arg1, %c0_i32 : i32, i32, i32
  }
  func.func @transform_4(%arg0: i32, %arg1: i32) -> (i32, i32, i32) {
    %c0_i32 = arith.constant 0 : i32
    %c0_i32_0 = arith.constant 0 : i32
    return %arg0, %arg1, %c0_i32 : i32, i32, i32
  }
}

</mosaic_0001>

<llo_original>
// kernel: qmha_forward.5
$region0: #{qmha_forward.5}
  #allocation0 [shape = 'u32[]', space=smem, size = 0x4, offset = 0x4, fixed_abs, tag = 'smem constant byte address 0x4 - core index']
  #allocation1 [shape = 'u32[144,128]{1,0:T(1,128)}', space=vmem, size = 0x12000, scoped, tag = 'internal scratch']
  %s0 = inlined_call_operand.vmem [shape: f32[16,128], index: 0, kind: input, shape index: {}]
  %s1 = inlined_call_operand.vmem [shape: f32[128,128], index: 1, kind: input, shape index: {}]
  %s2 = inlined_call_operand.vmem [shape: f32[1,128], index: 2, kind: input, shape index: {}]
  %s3 = inlined_call_operand.vmem [shape: f32[16,128], index: 3, kind: output, shape index: {}]
  %s4 = sld [smem:[#allocation0]]
  $region22: #{qmha_forward.5} parent=0
    _
  %s6 = ssub.s32 1, %s4
  %s7 = scalar_select 0, %s6, %s4
  // Predicated region
  $region2: #{qmha_forward.5} parent=0 // pred_check
    _
  $region3: #{qmha_forward.5} parent=0 // pred_check_branch
    %9 = sbr.rel (0) target = $region5
  $region4: #{qmha_forward.5} parent=0 // pred_region
    _
  $region5: #{qmha_forward.5} parent=0 // pred_fallthru
    _
  // Predicated region
  $region6: #{qmha_forward.5} parent=0 // pred_check
    _
  $region7: #{qmha_forward.5} parent=0 // pred_check_branch
    %11 = sbr.rel (0) target = $region9
  $region8: #{qmha_forward.5} parent=0 // pred_region
    _
  $region9: #{qmha_forward.5} parent=0 // pred_fallthru
    _
  // Predicated region
  $region10: #{qmha_forward.5} parent=0 // pred_check
    _
  $region11: #{qmha_forward.5} parent=0 // pred_check_branch
    %13 = sbr.rel (0) target = $region13
  $region12: #{qmha_forward.5} parent=0 // pred_region
    _
  $region13: #{qmha_forward.5} parent=0 // pred_fallthru
    _
  %v14 = vld [vmem:[%s0] sm:$0xff]
  %v15 = vld [vmem:[%s0 + $0x8] sm:$0xff]
  %v16 = vld [vmem:[%s1] sm:$0xff]
  %v17 = vld [vmem:[%s1 + $0x8] sm:$0xff]
  %v18 = vld [vmem:[%s1 + $0x10] sm:$0xff]
  %v19 = vld [vmem:[%s1 + $0x18] sm:$0xff]
  %v20 = vld [vmem:[%s1 + $0x20] sm:$0xff]
  %v21 = vld [vmem:[%s1 + $0x28] sm:$0xff]
  %v22 = vld [vmem:[%s1 + $0x30] sm:$0xff]
  %v23 = vld [vmem:[%s1 + $0x38] sm:$0xff]
  %v24 = vld [vmem:[%s1 + $0x40] sm:$0xff]
  %v25 = vld [vmem:[%s1 + $0x48] sm:$0xff]
  %v26 = vld [vmem:[%s1 + $0x50] sm:$0xff]
  %v27 = vld [vmem:[%s1 + $0x58] sm:$0xff]
  %v28 = vld [vmem:[%s1 + $0x60] sm:$0xff]
  %v29 = vld [vmem:[%s1 + $0x68] sm:$0xff]
  %v30 = vld [vmem:[%s1 + $0x70] sm:$0xff]
  %v31 = vld [vmem:[%s1 + $0x78] sm:$0xff]
  %v32 = vld [vmem:[%s2] sm:$0x1]
  %v34 = vlaneseq
  %v35 = vshrl.u32 %v34, 7
  %v36 = vsub.s32 0, %v35
  %v37 = vrot.slane %v32, %v36
  %39 = vmatprep.subr.mxu0 0.0
  %40 = vmatpush1.msra.mxu0 %v16
  %41 = vmatprep.subr.mxu0 0.0
  %42 = vmatpush1.msra.mxu0 %v17
  %43 = vmatprep.subr.mxu0 0.0
  %44 = vmatpush1.msra.mxu0 %v18
  %45 = vmatprep.subr.mxu0 0.0
  %46 = vmatpush1.msra.mxu0 %v19
  %47 = vmatprep.subr.mxu0 0.0
  %48 = vmatpush1.msra.mxu0 %v20
  %49 = vmatprep.subr.mxu0 0.0
  %50 = vmatpush1.msra.mxu0 %v21
  %51 = vmatprep.subr.mxu0 0.0
  %52 = vmatpush1.msra.mxu0 %v22
  %53 = vmatprep.subr.mxu0 0.0
  %54 = vmatpush1.msra.mxu0 %v23
  %55 = vmatprep.subr.mxu0 0.0
  %56 = vmatpush1.msra.mxu0 %v24
  %57 = vmatprep.subr.mxu0 0.0
  %58 = vmatpush1.msra.mxu0 %v25
  %59 = vmatprep.subr.mxu0 0.0
  %60 = vmatpush1.msra.mxu0 %v26
  %61 = vmatprep.subr.mxu0 0.0
  %62 = vmatpush1.msra.mxu0 %v27
  %63 = vmatprep.subr.mxu0 0.0
  %64 = vmatpush1.msra.mxu0 %v28
  %65 = vmatprep.subr.mxu0 0.0
  %66 = vmatpush1.msra.mxu0 %v29
  %67 = vmatprep.subr.mxu0 0.0
  %68 = vmatpush1.msra.mxu0 %v30
  %69 = vmatprep.subr.mxu0 0.0
  %70 = vmatpush1.msra.mxu0 %v31
  %71 = vmatprep.subr.mxu0 0.0
  %72 = vmatpush1.msra.mxu0 0.0
  %73 = vmatprep.subr.mxu0 0.0
  %74 = vmatpush1.msra.mxu0 0.0
  %75 = vmatprep.subr.mxu0 0.0
  %76 = vmatpush1.msra.mxu0 0.0
  %77 = vmatprep.subr.mxu0 0.0
  %78 = vmatpush1.msra.mxu0 0.0
  %79 = vmatprep.subr.mxu0 0.0
  %80 = vmatpush1.msra.mxu0 0.0
  %81 = vmatprep.subr.mxu0 0.0
  %82 = vmatpush1.msra.mxu0 0.0
  %83 = vmatprep.subr.mxu0 0.0
  %84 = vmatpush1.msra.mxu0 0.0
  %85 = vmatprep.subr.mxu0 0.0
  %86 = vmatpush1.msra.mxu0 0.0
  %87 = vmatprep.subr.mxu0 0.0
  %88 = vmatpush1.msra.mxu0 0.0
  %89 = vmatprep.subr.mxu0 0.0
  %90 = vmatpush1.msra.mxu0 0.0
  %91 = vmatprep.subr.mxu0 0.0
  %92 = vmatpush1.msra.mxu0 0.0
  %93 = vmatprep.subr.mxu0 0.0
  %94 = vmatpush1.msra.mxu0 0.0
  %95 = vmatprep.subr.mxu0 0.0
  %96 = vmatpush1.msra.mxu0 0.0
  %97 = vmatprep.subr.mxu0 0.0
  %98 = vmatpush1.msra.mxu0 0.0
  %99 = vmatprep.subr.mxu0 0.0
  %100 = vmatpush1.msra.mxu0 0.0
  %101 = vmatprep.subr.mxu0 0.0
  %102 = vmatpush1.msra.mxu0 0.0
  %103 = vmatprep.mubr.f32.mxu0 0.0
  %104 = vmatmul.mubr.f32.gmra.mrb[0].mxu0 %v14
  %v105 = vpop.f32.mrb[0].mxu0
  %v106 = vadd.f32 %v37, %v105
  %v107 = vpop.f32.mrb[0].mxu0
  %108 = vmatprep.mubr.f32.mxu0 0.0
  %109 = vmatmul.mubr.f32.gmra.mrb[0].mxu0 %v15
  %v110 = vpop.f32.mrb[0].mxu0
  %v111 = vadd.f32 %v37, %v110
  %v112 = vpop.f32.mrb[0].mxu0
  %113 = vdwg.mxu0
  %114 = vst [vmem:[%s3] sm:$0xff] %v106
  %115 = vst [vmem:[%s3 + $0x8] sm:$0xff] %v111
  // Predicated region
  $region14: #{qmha_forward.5} parent=0 // pred_check
    _
  $region15: #{qmha_forward.5} parent=0 // pred_check_branch
    %117 = sbr.rel (0) target = $region17
  $region16: #{qmha_forward.5} parent=0 // pred_region
    _
  $region17: #{qmha_forward.5} parent=0 // pred_fallthru
    _
  // Predicated region
  $region18: #{qmha_forward.5} parent=0 // pred_check
    _
  $region19: #{qmha_forward.5} parent=0 // pred_check_branch
    %119 = sbr.rel (0) target = $region21
  $region20: #{qmha_forward.5} parent=0 // pred_region
    _
  $region21: #{qmha_forward.5} parent=0 // pred_fallthru
    _

// kernel: qmha_forward.3
$region0: #{qmha_forward.3}
  #allocation0 [shape = 'u32[]', space=smem, size = 0x4, offset = 0x4, fixed_abs, tag = 'smem constant byte address 0x4 - core index']
  #allocation1 [shape = 'u32[144,128]{1,0:T(1,128)}', space=vmem, size = 0x12000, scoped, tag = 'internal scratch']
  %s0 = inlined_call_operand.vmem [shape: f32[16,128], index: 0, kind: input, shape index: {}]
  %s1 = inlined_call_operand.hbm [shape: f32[128,128], index: 1, kind: input, shape index: {}]
  %s2 = inlined_call_operand.hbm [shape: f32[128,128], index: 2, kind: input, shape index: {}]
  %s3 = inlined_call_operand.hbm [shape: f32[128,128], index: 3, kind: input, shape index: {}]
  %s4 = inlined_call_operand.vmem [shape: f32[1,128], index: 4, kind: input, shape index: {}]
  %s5 = inlined_call_operand.vmem [shape: f32[1,128], index: 5, kind: input, shape index: {}]
  %s6 = inlined_call_operand.vmem [shape: f32[1,128], index: 6, kind: input, shape index: {}]
  %s7 = inlined_call_operand.vmem [shape: f32[16,128], index: 7, kind: output, shape index: {0}]
  %s8 = inlined_call_operand.vmem [shape: f32[16,128], index: 8, kind: output, shape index: {1}]
  %s9 = inlined_call_operand.vmem [shape: f32[16,128], index: 9, kind: output, shape index: {2}]
  %10 = xla_tuple %s7, %s8, %s9
  %s11 = sld [smem:[#allocation0]]
  $region66: #{qmha_forward.3} parent=0
    _
  %s13 = ssub.s32 1, %s11
  %s14 = scalar_select 0, %s13, %s11
  $region1: #{qmha_forward.3} parent=0
    #allocation2 [shape = 'u8[65536]{0}', space=vmem, size = 0x10000, scoped, tag = 'input window, operand 1, single buffered']
    #allocation3 [shape = 's32[1]{0}', space=sflag, size = 0x4, scoped, tag = 'scoped memory for qmha_forward.3']
    #allocation4 [shape = 'u8[65536]{0}', space=vmem, size = 0x10000, scoped, tag = 'input window, operand 2, single buffered']
    #allocation5 [shape = 's32[1]{0}', space=sflag, size = 0x4, scoped, tag = 'scoped memory for qmha_forward.3']
    #allocation6 [shape = 'u8[65536]{0}', space=vmem, size = 0x10000, scoped, tag = 'input window, operand 3, single buffered']
    %15 = vsyncpa [#allocation3], 0
    %16 = vsyncpa [#allocation5], 0
    // Predicated region
    $region2: #{qmha_forward.3} parent=1 // pred_check
      _
    $region3: #{qmha_forward.3} parent=1 // pred_check_branch
      %18 = sbr.rel (0) target = $region5
    $region4: #{qmha_forward.3} parent=1 // pred_region
      _
    $region5: #{qmha_forward.3} parent=1 // pred_fallthru
      _
    // Predicated region
    $region6: #{qmha_forward.3} parent=1 // pred_check
      _
    $region7: #{qmha_forward.3} parent=1 // pred_check_branch
      %20 = sbr.rel (0) target = $region9
    $region8: #{qmha_forward.3} parent=1 // pred_region
      %s22 = ssub.s32 2048, 2048
      %23 = vsyncadd [#allocation3], %s22
      %s24 = sshll.u32 [#allocation2], 4
      %s25 = int_to_ptr.vmem [resolvable:$true] %s24
      %30 = dma.hbm_to_vmem [thread:$0]  %s1, 2048, %s25, [#allocation3], 128, 128, 8
    $region9: #{qmha_forward.3} parent=1 // pred_fallthru
      _
    // Predicated region
    $region10: #{qmha_forward.3} parent=1 // pred_check
      _
    $region11: #{qmha_forward.3} parent=1 // pred_check_branch
      %32 = sbr.rel (0) target = $region13
    $region12: #{qmha_forward.3} parent=1 // pred_region
      %s34 = ssub.s32 2048, 2048
      %35 = vsyncadd [#allocation5], %s34
      %s36 = sshll.u32 [#allocation4], 4
      %s37 = int_to_ptr.vmem [resolvable:$true] %s36
      %42 = dma.hbm_to_vmem [thread:$0]  %s2, 2048, %s37, [#allocation5], 128, 128, 8
    $region13: #{qmha_forward.3} parent=1 // pred_fallthru
      _
    // Predicated region
    $region14: #{qmha_forward.3} parent=1 // pred_check
      _
    $region15: #{qmha_forward.3} parent=1 // pred_check_branch
      %44 = sbr.rel (0) target = $region17
    $region16: #{qmha_forward.3} parent=1 // pred_region
      %s46 = ssub.s32 2048, 2048
      %47 = vsyncadd [#allocation5], %s46
      %s48 = sshll.u32 [#allocation6], 4
      %s49 = int_to_ptr.vmem [resolvable:$true] %s48
      %54 = dma.hbm_to_vmem [thread:$0]  %s3, 2048, %s49, [#allocation5], 128, 128, 8
    $region17: #{qmha_forward.3} parent=1 // pred_fallthru
      _
    // Predicated region
    $region18: #{qmha_forward.3} parent=1 // pred_check
      _
    $region19: #{qmha_forward.3} parent=1 // pred_check_branch
      %56 = sbr.rel (0) target = $region21
    $region20: #{qmha_forward.3} parent=1 // pred_region
      _
    $region21: #{qmha_forward.3} parent=1 // pred_fallthru
      _
    // Predicated region
    $region22: #{qmha_forward.3} parent=1 // pred_check
      _
    $region23: #{qmha_forward.3} parent=1 // pred_check_branch
      %58 = sbr.rel (0) target = $region25
    $region24: #{qmha_forward.3} parent=1 // pred_region
      _
    $region25: #{qmha_forward.3} parent=1 // pred_fallthru
      _
    // Predicated region
    $region26: #{qmha_forward.3} parent=1 // pred_check
      _
    $region27: #{qmha_forward.3} parent=1 // pred_check_branch
      %60 = sbr.rel (0) target = $region29
    $region28: #{qmha_forward.3} parent=1 // pred_region
      _
    $region29: #{qmha_forward.3} parent=1 // pred_fallthru
      _
    // Predicated region
    $region30: #{qmha_forward.3} parent=1 // pred_check
      _
    $region31: #{qmha_forward.3} parent=1 // pred_check_branch
      %62 = sbr.rel (0) target = $region33
    $region32: #{qmha_forward.3} parent=1 // pred_region
      %63 = dma.done [#allocation3], 2048
    $region33: #{qmha_forward.3} parent=1 // pred_fallthru
      _
    // Predicated region
    $region34: #{qmha_forward.3} parent=1 // pred_check
      _
    $region35: #{qmha_forward.3} parent=1 // pred_check_branch
      %65 = sbr.rel (0) target = $region37
    $region36: #{qmha_forward.3} parent=1 // pred_region
      %66 = dma.done [#allocation5], 2048
    $region37: #{qmha_forward.3} parent=1 // pred_fallthru
      _
    // Predicated region
    $region38: #{qmha_forward.3} parent=1 // pred_check
      _
    $region39: #{qmha_forward.3} parent=1 // pred_check_branch
      %68 = sbr.rel (0) target = $region41
    $region40: #{qmha_forward.3} parent=1 // pred_region
      %69 = dma.done [#allocation5], 2048
    $region41: #{qmha_forward.3} parent=1 // pred_fallthru
      _
    %v70 = vld [vmem:[%s0] sm:$0xff]
    %v71 = vld [vmem:[%s0 + $0x8] sm:$0xff]
    %v72 = vld [vmem:[#allocation2] sm:$0xff]
    %v73 = vld [vmem:[#allocation2 + $0x8] sm:$0xff]
    %v74 = vld [vmem:[#allocation2 + $0x10] sm:$0xff]
    %v75 = vld [vmem:[#allocation2 + $0x18] sm:$0xff]
    %v76 = vld [vmem:[#allocation2 + $0x20] sm:$0xff]
    %v77 = vld [vmem:[#allocation2 + $0x28] sm:$0xff]
    %v78 = vld [vmem:[#allocation2 + $0x30] sm:$0xff]
    %v79 = vld [vmem:[#allocation2 + $0x38] sm:$0xff]
    %v80 = vld [vmem:[#allocation2 + $0x40] sm:$0xff]
    %v81 = vld [vmem:[#allocation2 + $0x48] sm:$0xff]
    %v82 = vld [vmem:[#allocation2 + $0x50] sm:$0xff]
    %v83 = vld [vmem:[#allocation2 + $0x58] sm:$0xff]
    %v84 = vld [vmem:[#allocation2 + $0x60] sm:$0xff]
    %v85 = vld [vmem:[#allocation2 + $0x68] sm:$0xff]
    %v86 = vld [vmem:[#allocation2 + $0x70] sm:$0xff]
    %v87 = vld [vmem:[#allocation2 + $0x78] sm:$0xff]
    %v88 = vld [vmem:[%s4] sm:$0x1]
    %v90 = vlaneseq
    %v91 = vshrl.u32 %v90, 7
    %v92 = vsub.s32 0, %v91
    %v93 = vrot.slane %v88, %v92
    %95 = vmatprep.subr.mxu0 0.0
    %96 = vmatpush1.msra.mxu0 %v72
    %97 = vmatprep.subr.mxu0 0.0
    %98 = vmatpush1.msra.mxu0 %v73
    %99 = vmatprep.subr.mxu0 0.0
    %100 = vmatpush1.msra.mxu0 %v74
    %101 = vmatprep.subr.mxu0 0.0
    %102 = vmatpush1.msra.mxu0 %v75
    %103 = vmatprep.subr.mxu0 0.0
    %104 = vmatpush1.msra.mxu0 %v76
    %105 = vmatprep.subr.mxu0 0.0
    %106 = vmatpush1.msra.mxu0 %v77
    %107 = vmatprep.subr.mxu0 0.0
    %108 = vmatpush1.msra.mxu0 %v78
    %109 = vmatprep.subr.mxu0 0.0
    %110 = vmatpush1.msra.mxu0 %v79
    %111 = vmatprep.subr.mxu0 0.0
    %112 = vmatpush1.msra.mxu0 %v80
    %113 = vmatprep.subr.mxu0 0.0
    %114 = vmatpush1.msra.mxu0 %v81
    %115 = vmatprep.subr.mxu0 0.0
    %116 = vmatpush1.msra.mxu0 %v82
    %117 = vmatprep.subr.mxu0 0.0
    %118 = vmatpush1.msra.mxu0 %v83
    %119 = vmatprep.subr.mxu0 0.0
    %120 = vmatpush1.msra.mxu0 %v84
    %121 = vmatprep.subr.mxu0 0.0
    %122 = vmatpush1.msra.mxu0 %v85
    %123 = vmatprep.subr.mxu0 0.0
    %124 = vmatpush1.msra.mxu0 %v86
    %125 = vmatprep.subr.mxu0 0.0
    %126 = vmatpush1.msra.mxu0 %v87
    %127 = vmatprep.subr.mxu0 0.0
    %128 = vmatpush1.msra.mxu0 0.0
    %129 = vmatprep.subr.mxu0 0.0
    %130 = vmatpush1.msra.mxu0 0.0
    %131 = vmatprep.subr.mxu0 0.0
    %132 = vmatpush1.msra.mxu0 0.0
    %133 = vmatprep.subr.mxu0 0.0
    %134 = vmatpush1.msra.mxu0 0.0
    %135 = vmatprep.subr.mxu0 0.0
    %136 = vmatpush1.msra.mxu0 0.0
    %137 = vmatprep.subr.mxu0 0.0
    %138 = vmatpush1.msra.mxu0 0.0
    %139 = vmatprep.subr.mxu0 0.0
    %140 = vmatpush1.msra.mxu0 0.0
    %141 = vmatprep.subr.mxu0 0.0
    %142 = vmatpush1.msra.mxu0 0.0
    %143 = vmatprep.subr.mxu0 0.0
    %144 = vmatpush1.msra.mxu0 0.0
    %145 = vmatprep.subr.mxu0 0.0
    %146 = vmatpush1.msra.mxu0 0.0
    %147 = vmatprep.subr.mxu0 0.0
    %148 = vmatpush1.msra.mxu0 0.0
    %149 = vmatprep.subr.mxu0 0.0
    %150 = vmatpush1.msra.mxu0 0.0
    %151 = vmatprep.subr.mxu0 0.0
    %152 = vmatpush1.msra.mxu0 0.0
    %153 = vmatprep.subr.mxu0 0.0
    %154 = vmatpush1.msra.mxu0 0.0
    %155 = vmatprep.subr.mxu0 0.0
    %156 = vmatpush1.msra.mxu0 0.0
    %157 = vmatprep.subr.mxu0 0.0
    %158 = vmatpush1.msra.mxu0 0.0
    %159 = vmatprep.mubr.f32.mxu0 0.0
    %160 = vmatmul.mubr.f32.gmra.mrb[0].mxu0 %v70
    %v161 = vpop.f32.mrb[0].mxu0
    %v162 = vadd.f32 %v93, %v161
    %v163 = vpop.f32.mrb[0].mxu0
    %164 = vmatprep.mubr.f32.mxu0 0.0
    %165 = vmatmul.mubr.f32.gmra.mrb[0].mxu0 %v71
    %v166 = vpop.f32.mrb[0].mxu0
    %v167 = vadd.f32 %v93, %v166
    %v168 = vpop.f32.mrb[0].mxu0
    %169 = vdwg.mxu0
    %170 = vst [vmem:[%s7] sm:$0xff] %v162
    %171 = vst [vmem:[%s7 + $0x8] sm:$0xff] %v167
    %v172 = vld [vmem:[#allocation4] sm:$0xff]
    %v173 = vld [vmem:[#allocation4 + $0x8] sm:$0xff]
    %v174 = vld [vmem:[#allocation4 + $0x10] sm:$0xff]
    %v175 = vld [vmem:[#allocation4 + $0x18] sm:$0xff]
    %v176 = vld [vmem:[#allocation4 + $0x20] sm:$0xff]
    %v177 = vld [vmem:[#allocation4 + $0x28] sm:$0xff]
    %v178 = vld [vmem:[#allocation4 + $0x30] sm:$0xff]
    %v179 = vld [vmem:[#allocation4 + $0x38] sm:$0xff]
    %v180 = vld [vmem:[#allocation4 + $0x40] sm:$0xff]
    %v181 = vld [vmem:[#allocation4 + $0x48] sm:$0xff]
    %v182 = vld [vmem:[#allocation4 + $0x50] sm:$0xff]
    %v183 = vld [vmem:[#allocation4 + $0x58] sm:$0xff]
    %v184 = vld [vmem:[#allocation4 + $0x60] sm:$0xff]
    %v185 = vld [vmem:[#allocation4 + $0x68] sm:$0xff]
    %v186 = vld [vmem:[#allocation4 + $0x70] sm:$0xff]
    %v187 = vld [vmem:[#allocation4 + $0x78] sm:$0xff]
    %v188 = vld [vmem:[%s5] sm:$0x1]
    %v190 = vlaneseq
    %v191 = vshrl.u32 %v190, 7
    %v192 = vsub.s32 0, %v191
    %v193 = vrot.slane %v188, %v192
    %195 = vmatprep.subr.mxu0 0.0
    %196 = vmatpush1.msra.mxu0 %v172
    %197 = vmatprep.subr.mxu0 0.0
    %198 = vmatpush1.msra.mxu0 %v173
    %199 = vmatprep.subr.mxu0 0.0
    %200 = vmatpush1.msra.mxu0 %v174
    %201 = vmatprep.subr.mxu0 0.0
    %202 = vmatpush1.msra.mxu0 %v175
    %203 = vmatprep.subr.mxu0 0.0
    %204 = vmatpush1.msra.mxu0 %v176
    %205 = vmatprep.subr.mxu0 0.0
    %206 = vmatpush1.msra.mxu0 %v177
    %207 = vmatprep.subr.mxu0 0.0
    %208 = vmatpush1.msra.mxu0 %v178
    %209 = vmatprep.subr.mxu0 0.0
    %210 = vmatpush1.msra.mxu0 %v179
    %211 = vmatprep.subr.mxu0 0.0
    %212 = vmatpush1.msra.mxu0 %v180
    %213 = vmatprep.subr.mxu0 0.0
    %214 = vmatpush1.msra.mxu0 %v181
    %215 = vmatprep.subr.mxu0 0.0
    %216 = vmatpush1.msra.mxu0 %v182
    %217 = vmatprep.subr.mxu0 0.0
    %218 = vmatpush1.msra.mxu0 %v183
    %219 = vmatprep.subr.mxu0 0.0
    %220 = vmatpush1.msra.mxu0 %v184
    %221 = vmatprep.subr.mxu0 0.0
    %222 = vmatpush1.msra.mxu0 %v185
    %223 = vmatprep.subr.mxu0 0.0
    %224 = vmatpush1.msra.mxu0 %v186
    %225 = vmatprep.subr.mxu0 0.0
    %226 = vmatpush1.msra.mxu0 %v187
    %227 = vmatprep.subr.mxu0 0.0
    %228 = vmatpush1.msra.mxu0 0.0
    %229 = vmatprep.subr.mxu0 0.0
    %230 = vmatpush1.msra.mxu0 0.0
    %231 = vmatprep.subr.mxu0 0.0
    %232 = vmatpush1.msra.mxu0 0.0
    %233 = vmatprep.subr.mxu0 0.0
    %234 = vmatpush1.msra.mxu0 0.0
    %235 = vmatprep.subr.mxu0 0.0
    %236 = vmatpush1.msra.mxu0 0.0
    %237 = vmatprep.subr.mxu0 0.0
    %238 = vmatpush1.msra.mxu0 0.0
    %239 = vmatprep.subr.mxu0 0.0
    %240 = vmatpush1.msra.mxu0 0.0
    %241 = vmatprep.subr.mxu0 0.0
    %242 = vmatpush1.msra.mxu0 0.0
    %243 = vmatprep.subr.mxu0 0.0
    %244 = vmatpush1.msra.mxu0 0.0
    %245 = vmatprep.subr.mxu0 0.0
    %246 = vmatpush1.msra.mxu0 0.0
    %247 = vmatprep.subr.mxu0 0.0
    %248 = vmatpush1.msra.mxu0 0.0
    %249 = vmatprep.subr.mxu0 0.0
    %250 = vmatpush1.msra.mxu0 0.0
    %251 = vmatprep.subr.mxu0 0.0
    %252 = vmatpush1.msra.mxu0 0.0
    %253 = vmatprep.subr.mxu0 0.0
    %254 = vmatpush1.msra.mxu0 0.0
    %255 = vmatprep.subr.mxu0 0.0
    %256 = vmatpush1.msra.mxu0 0.0
    %257 = vmatprep.subr.mxu0 0.0
    %258 = vmatpush1.msra.mxu0 0.0
    %259 = vmatprep.mubr.f32.mxu0 0.0
    %260 = vmatmul.mubr.f32.gmra.mrb[0].mxu0 %v70
    %v261 = vpop.f32.mrb[0].mxu0
    %v262 = vadd.f32 %v193, %v261
    %v263 = vpop.f32.mrb[0].mxu0
    %264 = vmatprep.mubr.f32.mxu0 0.0
    %265 = vmatmul.mubr.f32.gmra.mrb[0].mxu0 %v71
    %v266 = vpop.f32.mrb[0].mxu0
    %v267 = vadd.f32 %v193, %v266
    %v268 = vpop.f32.mrb[0].mxu0
    %269 = vdwg.mxu0
    %270 = vst [vmem:[%s8] sm:$0xff] %v262
    %271 = vst [vmem:[%s8 + $0x8] sm:$0xff] %v267
    %v272 = vld [vmem:[#allocation6] sm:$0xff]
    %v273 = vld [vmem:[#allocation6 + $0x8] sm:$0xff]
    %v274 = vld [vmem:[#allocation6 + $0x10] sm:$0xff]
    %v275 = vld [vmem:[#allocation6 + $0x18] sm:$0xff]
    %v276 = vld [vmem:[#allocation6 + $0x20] sm:$0xff]
    %v277 = vld [vmem:[#allocation6 + $0x28] sm:$0xff]
    %v278 = vld [vmem:[#allocation6 + $0x30] sm:$0xff]
    %v279 = vld [vmem:[#allocation6 + $0x38] sm:$0xff]
    %v280 = vld [vmem:[#allocation6 + $0x40] sm:$0xff]
    %v281 = vld [vmem:[#allocation6 + $0x48] sm:$0xff]
    %v282 = vld [vmem:[#allocation6 + $0x50] sm:$0xff]
    %v283 = vld [vmem:[#allocation6 + $0x58] sm:$0xff]
    %v284 = vld [vmem:[#allocation6 + $0x60] sm:$0xff]
    %v285 = vld [vmem:[#allocation6 + $0x68] sm:$0xff]
    %v286 = vld [vmem:[#allocation6 + $0x70] sm:$0xff]
    %v287 = vld [vmem:[#allocation6 + $0x78] sm:$0xff]
    %v288 = vld [vmem:[%s6] sm:$0x1]
    %v290 = vlaneseq
    %v291 = vshrl.u32 %v290, 7
    %v292 = vsub.s32 0, %v291
    %v293 = vrot.slane %v288, %v292
    %295 = vmatprep.subr.mxu0 0.0
    %296 = vmatpush1.msra.mxu0 %v272
    %297 = vmatprep.subr.mxu0 0.0
    %298 = vmatpush1.msra.mxu0 %v273
    %299 = vmatprep.subr.mxu0 0.0
    %300 = vmatpush1.msra.mxu0 %v274
    %301 = vmatprep.subr.mxu0 0.0
    %302 = vmatpush1.msra.mxu0 %v275
    %303 = vmatprep.subr.mxu0 0.0
    %304 = vmatpush1.msra.mxu0 %v276
    %305 = vmatprep.subr.mxu0 0.0
    %306 = vmatpush1.msra.mxu0 %v277
    %307 = vmatprep.subr.mxu0 0.0
    %308 = vmatpush1.msra.mxu0 %v278
    %309 = vmatprep.subr.mxu0 0.0
    %310 = vmatpush1.msra.mxu0 %v279
    %311 = vmatprep.subr.mxu0 0.0
    %312 = vmatpush1.msra.mxu0 %v280
    %313 = vmatprep.subr.mxu0 0.0
    %314 = vmatpush1.msra.mxu0 %v281
    %315 = vmatprep.subr.mxu0 0.0
    %316 = vmatpush1.msra.mxu0 %v282
    %317 = vmatprep.subr.mxu0 0.0
    %318 = vmatpush1.msra.mxu0 %v283
    %319 = vmatprep.subr.mxu0 0.0
    %320 = vmatpush1.msra.mxu0 %v284
    %321 = vmatprep.subr.mxu0 0.0
    %322 = vmatpush1.msra.mxu0 %v285
    %323 = vmatprep.subr.mxu0 0.0
    %324 = vmatpush1.msra.mxu0 %v286
    %325 = vmatprep.subr.mxu0 0.0
    %326 = vmatpush1.msra.mxu0 %v287
    %327 = vmatprep.subr.mxu0 0.0
    %328 = vmatpush1.msra.mxu0 0.0
    %329 = vmatprep.subr.mxu0 0.0
    %330 = vmatpush1.msra.mxu0 0.0
    %331 = vmatprep.subr.mxu0 0.0
    %332 = vmatpush1.msra.mxu0 0.0
    %333 = vmatprep.subr.mxu0 0.0
    %334 = vmatpush1.msra.mxu0 0.0
    %335 = vmatprep.subr.mxu0 0.0
    %336 = vmatpush1.msra.mxu0 0.0
    %337 = vmatprep.subr.mxu0 0.0
    %338 = vmatpush1.msra.mxu0 0.0
    %339 = vmatprep.subr.mxu0 0.0
    %340 = vmatpush1.msra.mxu0 0.0
    %341 = vmatprep.subr.mxu0 0.0
    %342 = vmatpush1.msra.mxu0 0.0
    %343 = vmatprep.subr.mxu0 0.0
    %344 = vmatpush1.msra.mxu0 0.0
    %345 = vmatprep.subr.mxu0 0.0
    %346 = vmatpush1.msra.mxu0 0.0
    %347 = vmatprep.subr.mxu0 0.0
    %348 = vmatpush1.msra.mxu0 0.0
    %349 = vmatprep.subr.mxu0 0.0
    %350 = vmatpush1.msra.mxu0 0.0
    %351 = vmatprep.subr.mxu0 0.0
    %352 = vmatpush1.msra.mxu0 0.0
    %353 = vmatprep.subr.mxu0 0.0
    %354 = vmatpush1.msra.mxu0 0.0
    %355 = vmatprep.subr.mxu0 0.0
    %356 = vmatpush1.msra.mxu0 0.0
    %357 = vmatprep.subr.mxu0 0.0
    %358 = vmatpush1.msra.mxu0 0.0
    %359 = vmatprep.mubr.f32.mxu0 0.0
    %360 = vmatmul.mubr.f32.gmra.mrb[0].mxu0 %v70
    %v361 = vpop.f32.mrb[0].mxu0
    %v362 = vadd.f32 %v293, %v361
    %v363 = vpop.f32.mrb[0].mxu0
    %364 = vmatprep.mubr.f32.mxu0 0.0
    %365 = vmatmul.mubr.f32.gmra.mrb[0].mxu0 %v71
    %v366 = vpop.f32.mrb[0].mxu0
    %v367 = vadd.f32 %v293, %v366
    %v368 = vpop.f32.mrb[0].mxu0
    %369 = vdwg.mxu0
    %370 = vst [vmem:[%s9] sm:$0xff] %v362
    %371 = vst [vmem:[%s9 + $0x8] sm:$0xff] %v367
    // Predicated region
    $region42: #{qmha_forward.3} parent=1 // pred_check
      _
    $region43: #{qmha_forward.3} parent=1 // pred_check_branch
      %373 = sbr.rel (0) target = $region45
    $region44: #{qmha_forward.3} parent=1 // pred_region
      _
    $region45: #{qmha_forward.3} parent=1 // pred_fallthru
      _
    // Predicated region
    $region46: #{qmha_forward.3} parent=1 // pred_check
      _
    $region47: #{qmha_forward.3} parent=1 // pred_check_branch
      %375 = sbr.rel (0) target = $region49
    $region48: #{qmha_forward.3} parent=1 // pred_region
      _
    $region49: #{qmha_forward.3} parent=1 // pred_fallthru
      _
    // Predicated region
    $region50: #{qmha_forward.3} parent=1 // pred_check
      _
    $region51: #{qmha_forward.3} parent=1 // pred_check_branch
      %377 = sbr.rel (0) target = $region53
    $region52: #{qmha_forward.3} parent=1 // pred_region
      _
    $region53: #{qmha_forward.3} parent=1 // pred_fallthru
      _
    // Predicated region
    $region54: #{qmha_forward.3} parent=1 // pred_check
      _
    $region55: #{qmha_forward.3} parent=1 // pred_check_branch
      %379 = sbr.rel (0) target = $region57
    $region56: #{qmha_forward.3} parent=1 // pred_region
      _
    $region57: #{qmha_forward.3} parent=1 // pred_fallthru
      _
    // Predicated region
    $region58: #{qmha_forward.3} parent=1 // pred_check
      _
    $region59: #{qmha_forward.3} parent=1 // pred_check_branch
      %381 = sbr.rel (0) target = $region61
    $region60: #{qmha_forward.3} parent=1 // pred_region
      _
    $region61: #{qmha_forward.3} parent=1 // pred_fallthru
      _
    // Predicated region
    $region62: #{qmha_forward.3} parent=1 // pred_check
      _
    $region63: #{qmha_forward.3} parent=1 // pred_check_branch
      %383 = sbr.rel (0) target = $region65
    $region64: #{qmha_forward.3} parent=1 // pred_region
      _
    $region65: #{qmha_forward.3} parent=1 // pred_fallthru
      _
    %384 = vsyncpa [#allocation3], 1
    %385 = vsyncpa [#allocation5], 1

// kernel: qmha_forward.4
$region0: #{qmha_forward.4}
  #allocation0 [shape = 'u32[]', space=smem, size = 0x4, offset = 0x4, fixed_abs, tag = 'smem constant byte address 0x4 - core index']
  #allocation1 [shape = 'u32[144,128]{1,0:T(1,128)}', space=vmem, size = 0x12000, scoped, tag = 'internal scratch']
  %s0 = inlined_call_operand.vmem [shape: f32[2,8,128], index: 0, kind: input, shape index: {}]
  %s1 = inlined_call_operand.vmem [shape: f32[2,8,128], index: 1, kind: input, shape index: {}]
  %s2 = inlined_call_operand.vmem [shape: f32[2,8,128], index: 2, kind: input, shape index: {}]
  %s3 = inlined_call_operand.vmem [shape: f32[2,8,128], index: 3, kind: output, shape index: {0}]
  %s4 = inlined_call_operand.hbm [shape: f32[2,8,8], index: 4, kind: output, shape index: {1}]
  %5 = xla_tuple %s3, %s4
  %s6 = sld [smem:[#allocation0]]
  $region53: #{qmha_forward.4} parent=0
    _
  %s8 = ssub.s32 1, %s6
  %s9 = scalar_select 0, %s8, %s6
  $region1: #{qmha_forward.4} parent=0
    #allocation2 [shape = 'u8[8192]{0}', space=vmem, size = 0x2000, scoped, tag = 'output window, operand 1']
    #allocation3 [shape = 's32[2]{0}', space=sflag, size = 0x8, scoped, tag = 'scoped memory for qmha_forward.4']
    %10 = vsyncpa [#allocation3], 0
    %s11 = scalar_lea.sflag [#allocation3], 1
    %12 = vsyncpa %s11, 0
    loop: start=0, step=1, limit=4
    $region2: #{qmha_forward.4} parent=1 // loop_pre_header
      _
    $region3: #{qmha_forward.4} parent=1 // loop_header
      %s14 = sphi 0, %s18
      %p15 = scmp.ge.s32.totalorder %s14, 4
      %s21 = sphi 0, %s33
      %s22 = sphi 0, %s29
      %s23 = sphi 0, %s21
      %s24 = sphi 0, %s22
      %s25 = sphi 0, %s23
      %s26 = sphi 0, %s24
      %s38 = sphi 0, %s40
      %s41 = sphi 0, %s38
      %s42 = sphi 0, %s41
      %s58 = sphi 0, %s42
      %s64 = sphi 0, %s66
      %s67 = sphi 0, %s64
      %s68 = sphi 0, %s67
      %s84 = sphi 0, %s68
      %s90 = sphi 0, %s92
      %s93 = sphi 0, %s90
      %s94 = sphi 0, %s93
      %s110 = sphi 0, %s94
      %s118 = sphi 0, %s120
      %s121 = sphi 0, %s118
      %s122 = sphi 0, %s121
      %s138 = sphi 0, %s122
      %s146 = sphi 0, %s148
      %s149 = sphi 0, %s146
      %s150 = sphi 0, %s149
      %s166 = sphi 0, %s150
    $region4: #{qmha_forward.4} parent=1 // loop_header_branch
      %17 = sbr.rel (%p15) target = $region8
    $region5: #{qmha_forward.4} parent=1 // loop_body
      %s19 = ssub.s32 %s14, 1
      %s20 = ssub.s32 %s14, 2
      %s27 = sadd.s32 1, %s22
      %p28 = scmp.ge.s32.totalorder %s27, 1
      %s29 = scalar_select %p28, 0, %s27
      %s30 = sadd.s32 1, %s21
      %s31 = scalar_select %p28, %s30, %s21
      %p32 = scmp.ge.s32.totalorder %s31, 2
      %s33 = scalar_select %p32, 0, %s31
      %s34 = ssub.s32 %s21, %s33
      %s35 = ssub.s32 %s22, %s29
      %s36 = sor.u32 %s34, %s35
      %p37 = scmp.eq.s32.totalorder %s36, 0
      %s39 = sadd.s32 %s38, 1
      %s40 = scalar_select %p37, %s38, %s39
      %p43 = pneg %p37
      %p44 = scmp.eq.s32.totalorder %s14, 1
      %p45 = por %p43, %p44
      %p46 = scmp.ne.s32.totalorder %s38, %s41
      %p47 = scmp.eq.s32.totalorder %s14, 0
      %p48 = por %p46, %p47
      %p49 = scmp.ne.s32.totalorder %s38, %s41
      %p50 = scmp.eq.s32.totalorder %s19, 1
      %p51 = por %p49, %p50
      %p52 = scmp.ne.s32.totalorder %s41, %s42
      %p53 = scmp.eq.s32.totalorder %s19, 0
      %p54 = por %p52, %p53
      %p55 = scmp.ne.s32.totalorder %s41, %s42
      %p56 = scmp.eq.s32.totalorder %s20, 1
      %p57 = por %p55, %p56
      %p59 = scmp.ne.s32.totalorder %s42, %s58
      %p60 = scmp.eq.s32.totalorder %s20, 0
      %p61 = por %p59, %p60
      %s62 = ssub.s32 %s21, %s33
      %p63 = scmp.eq.s32.totalorder %s62, 0
      %s65 = sadd.s32 %s64, 1
      %s66 = scalar_select %p63, %s64, %s65
      %p69 = pneg %p63
      %p70 = scmp.eq.s32.totalorder %s14, 1
      %p71 = por %p69, %p70
      %p72 = scmp.ne.s32.totalorder %s64, %s67
      %p73 = scmp.eq.s32.totalorder %s14, 0
      %p74 = por %p72, %p73
      %p75 = scmp.ne.s32.totalorder %s64, %s67
      %p76 = scmp.eq.s32.totalorder %s19, 1
      %p77 = por %p75, %p76
      %p78 = scmp.ne.s32.totalorder %s67, %s68
      %p79 = scmp.eq.s32.totalorder %s19, 0
      %p80 = por %p78, %p79
      %p81 = scmp.ne.s32.totalorder %s67, %s68
      %p82 = scmp.eq.s32.totalorder %s20, 1
      %p83 = por %p81, %p82
      %p85 = scmp.ne.s32.totalorder %s68, %s84
      %p86 = scmp.eq.s32.totalorder %s20, 0
      %p87 = por %p85, %p86
      %s88 = ssub.s32 %s21, %s33
      %p89 = scmp.eq.s32.totalorder %s88, 0
      %s91 = sadd.s32 %s90, 1
      %s92 = scalar_select %p89, %s90, %s91
      %p95 = pneg %p89
      %p96 = scmp.eq.s32.totalorder %s14, 1
      %p97 = por %p95, %p96
      %p98 = scmp.ne.s32.totalorder %s90, %s93
      %p99 = scmp.eq.s32.totalorder %s14, 0
      %p100 = por %p98, %p99
      %p101 = scmp.ne.s32.totalorder %s90, %s93
      %p102 = scmp.eq.s32.totalorder %s19, 1
      %p103 = por %p101, %p102
      %p104 = scmp.ne.s32.totalorder %s93, %s94
      %p105 = scmp.eq.s32.totalorder %s19, 0
      %p106 = por %p104, %p105
      %p107 = scmp.ne.s32.totalorder %s93, %s94
      %p108 = scmp.eq.s32.totalorder %s20, 1
      %p109 = por %p107, %p108
      %p111 = scmp.ne.s32.totalorder %s94, %s110
      %p112 = scmp.eq.s32.totalorder %s20, 0
      %p113 = por %p111, %p112
      %s114 = ssub.s32 %s21, %s33
      %s115 = ssub.s32 %s22, %s29
      %s116 = sor.u32 %s114, %s115
      %p117 = scmp.eq.s32.totalorder %s116, 0
      %s119 = sadd.s32 %s118, 1
      %s120 = scalar_select %p117, %s118, %s119
      %p123 = pneg %p117
      %p124 = scmp.eq.s32.totalorder %s14, 1
      %p125 = por %p123, %p124
      %p126 = scmp.ne.s32.totalorder %s118, %s121
      %p127 = scmp.eq.s32.totalorder %s14, 0
      %p128 = por %p126, %p127
      %p129 = scmp.ne.s32.totalorder %s118, %s121
      %p130 = scmp.eq.s32.totalorder %s19, 1
      %p131 = por %p129, %p130
      %p132 = scmp.ne.s32.totalorder %s121, %s122
      %p133 = scmp.eq.s32.totalorder %s19, 0
      %p134 = por %p132, %p133
      %p135 = scmp.ne.s32.totalorder %s121, %s122
      %p136 = scmp.eq.s32.totalorder %s20, 1
      %p137 = por %p135, %p136
      %p139 = scmp.ne.s32.totalorder %s122, %s138
      %p140 = scmp.eq.s32.totalorder %s20, 0
      %p141 = por %p139, %p140
      %s142 = ssub.s32 %s21, %s33
      %s143 = ssub.s32 %s22, %s29
      %s144 = sor.u32 %s142, %s143
      %p145 = scmp.eq.s32.totalorder %s144, 0
      %s147 = sadd.s32 %s146, 1
      %s148 = scalar_select %p145, %s146, %s147
      %p151 = pneg %p145
      %p152 = scmp.eq.s32.totalorder %s14, 1
      %p153 = por %p151, %p152
      %p154 = scmp.ne.s32.totalorder %s146, %s149
      %p155 = scmp.eq.s32.totalorder %s14, 0
      %p156 = por %p154, %p155
      %p157 = scmp.ne.s32.totalorder %s146, %s149
      %p158 = scmp.eq.s32.totalorder %s19, 1
      %p159 = por %p157, %p158
      %p160 = scmp.ne.s32.totalorder %s149, %s150
      %p161 = scmp.eq.s32.totalorder %s19, 0
      %p162 = por %p160, %p161
      %p163 = scmp.ne.s32.totalorder %s149, %s150
      %p164 = scmp.eq.s32.totalorder %s20, 1
      %p165 = por %p163, %p164
      %p167 = scmp.ne.s32.totalorder %s150, %s166
      %p168 = scmp.eq.s32.totalorder %s20, 0
      %p169 = por %p167, %p168
      %p170 = scmp.le.s32.totalorder 1, %s14
      %p171 = scmp.lt.s32.totalorder %s14, 3
      %p172 = pnand %p170, %p171
      %p173 = pneg %p172
      // Predicated region
      $region9: #{qmha_forward.4} parent=5 // pred_check
        _
      $region10: #{qmha_forward.4} parent=5 // pred_check_branch
        %175 = sbr.rel (%p172) target = $region12
      $region11: #{qmha_forward.4} parent=5 // pred_region
        %s176 = ssub.s32 %s14, 1
      $region12: #{qmha_forward.4} parent=5 // pred_fallthru
        _
      %p177 = scmp.lt.s32.totalorder %s14, 2
      // Predicated region
      $region13: #{qmha_forward.4} parent=5 // pred_check
        %p178 = pneg %p177
      $region14: #{qmha_forward.4} parent=5 // pred_check_branch
        %180 = sbr.rel (%p178) target = $region16
      $region15: #{qmha_forward.4} parent=5 // pred_region
        // Predicated region
        $region17: #{qmha_forward.4} parent=15 // pred_check
          %p181 = pneg %p48
        $region18: #{qmha_forward.4} parent=15 // pred_check_branch
          %183 = sbr.rel (%p181) target = $region20
        $region19: #{qmha_forward.4} parent=15 // pred_region
          %p184 = scmp.lt.s32.totalorder %s21, 1
          %s185 = scalar_select %p184, %s21, 1
          %p186 = scmp.lt.s32.totalorder %s22, 0
          %s187 = scalar_select %p186, %s22, 0
          %s188 = sadd.s32 %s187, %s185
          %s189 = smul.addr %s188, 8
          %s190 = scalar_lea.vmem %s0, %s189
        $region20: #{qmha_forward.4} parent=15 // pred_fallthru
          _
        // Predicated region
        $region21: #{qmha_forward.4} parent=15 // pred_check
          %p191 = pneg %p74
        $region22: #{qmha_forward.4} parent=15 // pred_check_branch
          %193 = sbr.rel (%p191) target = $region24
        $region23: #{qmha_forward.4} parent=15 // pred_region
          %p194 = scmp.lt.s32.totalorder %s21, 1
          %s195 = scalar_select %p194, %s21, 1
          %s196 = smul.addr %s195, 8
          %s197 = scalar_lea.vmem %s1, %s196
        $region24: #{qmha_forward.4} parent=15 // pred_fallthru
          _
        // Predicated region
        $region25: #{qmha_forward.4} parent=15 // pred_check
          %p198 = pneg %p100
        $region26: #{qmha_forward.4} parent=15 // pred_check_branch
          %200 = sbr.rel (%p198) target = $region28
        $region27: #{qmha_forward.4} parent=15 // pred_region
          %p201 = scmp.lt.s32.totalorder %s21, 1
          %s202 = scalar_select %p201, %s21, 1
          %s203 = smul.addr %s202, 8
          %s204 = scalar_lea.vmem %s2, %s203
        $region28: #{qmha_forward.4} parent=15 // pred_fallthru
          _
      $region16: #{qmha_forward.4} parent=5 // pred_fallthru
        _
      %p205 = scmp.le.s32.totalorder 1, %s14
      %p206 = scmp.lt.s32.totalorder %s14, 3
      %p207 = pnand %p205, %p206
      %p208 = pneg %p207
      // Predicated region
      $region29: #{qmha_forward.4} parent=5 // pred_check
        _
      $region30: #{qmha_forward.4} parent=5 // pred_check_branch
        %210 = sbr.rel (%p207) target = $region32
      $region31: #{qmha_forward.4} parent=5 // pred_region
        %s211 = ssub.s32 %s14, 1
        %p212 = scmp.lt.s32.totalorder %s23, 1
        %s213 = scalar_select %p212, %s23, 1
        %p214 = scmp.lt.s32.totalorder %s24, 0
        %s215 = scalar_select %p214, %s24, 0
        %s216 = sadd.s32 %s215, %s213
        %s217 = smul.addr %s216, 8
        %s218 = scalar_lea.vmem %s0, %s217
        %p219 = pneg %p54
        %p220 = pneg %p51
        %p221 = scmp.lt.s32.totalorder %s23, 1
        %s222 = scalar_select %p221, %s23, 1
        %s223 = smul.addr %s222, 8
        %s224 = scalar_lea.vmem %s1, %s223
        %p225 = pneg %p80
        %p226 = pneg %p77
        %p227 = scmp.lt.s32.totalorder %s23, 1
        %s228 = scalar_select %p227, %s23, 1
        %s229 = smul.addr %s228, 8
        %s230 = scalar_lea.vmem %s2, %s229
        %p231 = pneg %p106
        %p232 = pneg %p103
        %p233 = pneg %p134
        %p234 = pneg %p131
        %p235 = scmp.lt.s32.totalorder %s23, 1
        %s236 = scalar_select %p235, %s23, 1
        %p237 = scmp.lt.s32.totalorder %s24, 0
        %s238 = scalar_select %p237, %s24, 0
        %s239 = sadd.s32 %s238, %s236
        %s240 = smul.addr %s239, 8
        %s241 = scalar_lea.vmem %s3, %s240
        %p242 = pneg %p162
        %p243 = pneg %p159
        %s244 = sand.u32 %s149, 1
        %s245 = scalar_lea.sflag [#allocation3], %s244
        %s246 = sand.u32 %s149, 1
        %s247 = smul.addr %s246, 8
        %s248 = scalar_lea.vmem [#allocation2], %s247
        %p249 = scmp.lt.s32.totalorder %s23, 1
        %s250 = scalar_select %p249, %s23, 1
        %p251 = scmp.lt.s32.totalorder %s24, 0
        %s252 = scalar_select %p251, %s24, 0
        %s253 = sadd.s32 %s252, %s250
        %s254 = smul.addr %s253, 8
        %s255 = scalar_lea.vmem %s0, %s254
        %p256 = scmp.lt.s32.totalorder %s23, 1
        %s257 = scalar_select %p256, %s23, 1
        %s258 = smul.addr %s257, 8
        %s259 = scalar_lea.vmem %s1, %s258
        %p260 = scmp.lt.s32.totalorder %s23, 1
        %s261 = scalar_select %p260, %s23, 1
        %s262 = smul.addr %s261, 8
        %s263 = scalar_lea.vmem %s2, %s262
        %p264 = scmp.lt.s32.totalorder %s23, 1
        %s265 = scalar_select %p264, %s23, 1
        %p266 = scmp.lt.s32.totalorder %s24, 0
        %s267 = scalar_select %p266, %s24, 0
        %s268 = sadd.s32 %s267, %s265
        %s269 = smul.addr %s268, 8
        %s270 = scalar_lea.vmem %s3, %s269
        %v271 = vld [vmem:[%s255] sm:$0xff]
        %v272 = vld [vmem:[%s259] sm:$0xff]
        %v273 = vld [vmem:[%s263] sm:$0xff]
        %vm274 = vcmask 261120
        %v276 = vsel %vm274, %v271, 0
        %v279 = vsel %vm274, %v272, 0
        %281 = vmatprep.subr.mxu0 0.0
        %282 = vmatpush1.xpose.msra.mxu0 %v279
        %283 = vmatprep.subr.mxu0 0.0
        %284 = vmatpush1.xpose.msra.mxu0 0.0
        %285 = vmatprep.subr.mxu0 0.0
        %286 = vmatpush1.xpose.msra.mxu0 0.0
        %287 = vmatprep.subr.mxu0 0.0
        %288 = vmatpush1.xpose.msra.mxu0 0.0
        %289 = vmatprep.subr.mxu0 0.0
        %290 = vmatpush1.xpose.msra.mxu0 0.0
        %291 = vmatprep.subr.mxu0 0.0
        %292 = vmatpush1.xpose.msra.mxu0 0.0
        %293 = vmatprep.subr.mxu0 0.0
        %294 = vmatpush1.xpose.msra.mxu0 0.0
        %295 = vmatprep.subr.mxu0 0.0
        %296 = vmatpush1.xpose.msra.mxu0 0.0
        %297 = vmatprep.subr.mxu0 0.0
        %298 = vmatpush1.xpose.msra.mxu0 0.0
        %299 = vmatprep.subr.mxu0 0.0
        %300 = vmatpush1.xpose.msra.mxu0 0.0
        %301 = vmatprep.subr.mxu0 0.0
        %302 = vmatpush1.xpose.msra.mxu0 0.0
        %303 = vmatprep.subr.mxu0 0.0
        %304 = vmatpush1.xpose.msra.mxu0 0.0
        %305 = vmatprep.subr.mxu0 0.0
        %306 = vmatpush1.xpose.msra.mxu0 0.0
        %307 = vmatprep.subr.mxu0 0.0
        %308 = vmatpush1.xpose.msra.mxu0 0.0
        %309 = vmatprep.subr.mxu0 0.0
        %310 = vmatpush1.xpose.msra.mxu0 0.0
        %311 = vmatprep.subr.mxu0 0.0
        %312 = vmatpush1.xpose.msra.mxu0 0.0
        %313 = vmatprep.subr.mxu0 0.0
        %314 = vmatpush1.xpose.msra.mxu0 0.0
        %315 = vmatprep.subr.mxu0 0.0
        %316 = vmatpush1.xpose.msra.mxu0 0.0
        %317 = vmatprep.subr.mxu0 0.0
        %318 = vmatpush1.xpose.msra.mxu0 0.0
        %319 = vmatprep.subr.mxu0 0.0
        %320 = vmatpush1.xpose.msra.mxu0 0.0
        %321 = vmatprep.subr.mxu0 0.0
        %322 = vmatpush1.xpose.msra.mxu0 0.0
        %323 = vmatprep.subr.mxu0 0.0
        %324 = vmatpush1.xpose.msra.mxu0 0.0
        %325 = vmatprep.subr.mxu0 0.0
        %326 = vmatpush1.xpose.msra.mxu0 0.0
        %327 = vmatprep.subr.mxu0 0.0
        %328 = vmatpush1.xpose.msra.mxu0 0.0
        %329 = vmatprep.subr.mxu0 0.0
        %330 = vmatpush1.xpose.msra.mxu0 0.0
        %331 = vmatprep.subr.mxu0 0.0
        %332 = vmatpush1.xpose.msra.mxu0 0.0
        %333 = vmatprep.subr.mxu0 0.0
        %334 = vmatpush1.xpose.msra.mxu0 0.0
        %335 = vmatprep.subr.mxu0 0.0
        %336 = vmatpush1.xpose.msra.mxu0 0.0
        %337 = vmatprep.subr.mxu0 0.0
        %338 = vmatpush1.xpose.msra.mxu0 0.0
        %339 = vmatprep.subr.mxu0 0.0
        %340 = vmatpush1.xpose.msra.mxu0 0.0
        %341 = vmatprep.subr.mxu0 0.0
        %342 = vmatpush1.xpose.msra.mxu0 0.0
        %343 = vmatprep.subr.mxu0 0.0
        %344 = vmatpush1.xpose.msra.mxu0 0.0
        %345 = vmatprep.mubr.f32.mxu0 0.0
        %346 = vmatmul.mubr.f32.gmra.mrb[0].mxu0 %v276
        %v347 = vpop.f32.mrb[0].mxu0
        %v348 = vadd.f32 0.0, %v347
        %v349 = vpop.f32.mrb[0].mxu0
        %350 = vdwg.mxu0
        %vm351 = vcmask 64512
        %v352 = vsel %vm351, %v348, -inf
        %353 = vmax.xlane.f32.xlu0 %v352
        %v354 = vpop.xlane.xlu0 %353
        %v355 = vsub.f32 %v348, %v354
        %v356 = vmul.f32 %v355, 1.442695
        %v357 = vpow.pop %v356
        %v358 = vsel %vm351, %v357, 0.0
        %359 = vadd.xlane.f32.xlu0 %v358
        %v360 = vpop.xlane.xlu0 %359
        %v361 = vrcp.pop %v360
        %v362 = vmul.f32 %v360, %v361
        %v363 = vsub.f32 2.0, %v362
        %v364 = vmul.f32 %v361, %v363
        %v365 = vmul.f32 %v357, %v364
        %v367 = vsel %vm351, %v365, 0
        %369 = vmatprep.subr.mxu0 0.0
        %370 = vmatpush1.msra.mxu0 %v273
        %371 = vmatprep.subr.mxu0 0.0
        %372 = vmatpush1.msra.mxu0 0.0
        %373 = vmatprep.subr.mxu0 0.0
        %374 = vmatpush1.msra.mxu0 0.0
        %375 = vmatprep.subr.mxu0 0.0
        %376 = vmatpush1.msra.mxu0 0.0
        %377 = vmatprep.subr.mxu0 0.0
        %378 = vmatpush1.msra.mxu0 0.0
        %379 = vmatprep.subr.mxu0 0.0
        %380 = vmatpush1.msra.mxu0 0.0
        %381 = vmatprep.subr.mxu0 0.0
        %382 = vmatpush1.msra.mxu0 0.0
        %383 = vmatprep.subr.mxu0 0.0
        %384 = vmatpush1.msra.mxu0 0.0
        %385 = vmatprep.subr.mxu0 0.0
        %386 = vmatpush1.msra.mxu0 0.0
        %387 = vmatprep.subr.mxu0 0.0
        %388 = vmatpush1.msra.mxu0 0.0
        %389 = vmatprep.subr.mxu0 0.0
        %390 = vmatpush1.msra.mxu0 0.0
        %391 = vmatprep.subr.mxu0 0.0
        %392 = vmatpush1.msra.mxu0 0.0
        %393 = vmatprep.subr.mxu0 0.0
        %394 = vmatpush1.msra.mxu0 0.0
        %395 = vmatprep.subr.mxu0 0.0
        %396 = vmatpush1.msra.mxu0 0.0
        %397 = vmatprep.subr.mxu0 0.0
        %398 = vmatpush1.msra.mxu0 0.0
        %399 = vmatprep.subr.mxu0 0.0
        %400 = vmatpush1.msra.mxu0 0.0
        %401 = vmatprep.subr.mxu0 0.0
        %402 = vmatpush1.msra.mxu0 0.0
        %403 = vmatprep.subr.mxu0 0.0
        %404 = vmatpush1.msra.mxu0 0.0
        %405 = vmatprep.subr.mxu0 0.0
        %406 = vmatpush1.msra.mxu0 0.0
        %407 = vmatprep.subr.mxu0 0.0
        %408 = vmatpush1.msra.mxu0 0.0
        %409 = vmatprep.subr.mxu0 0.0
        %410 = vmatpush1.msra.mxu0 0.0
        %411 = vmatprep.subr.mxu0 0.0
        %412 = vmatpush1.msra.mxu0 0.0
        %413 = vmatprep.subr.mxu0 0.0
        %414 = vmatpush1.msra.mxu0 0.0
        %415 = vmatprep.subr.mxu0 0.0
        %416 = vmatpush1.msra.mxu0 0.0
        %417 = vmatprep.subr.mxu0 0.0
        %418 = vmatpush1.msra.mxu0 0.0
        %419 = vmatprep.subr.mxu0 0.0
        %420 = vmatpush1.msra.mxu0 0.0
        %421 = vmatprep.subr.mxu0 0.0
        %422 = vmatpush1.msra.mxu0 0.0
        %423 = vmatprep.subr.mxu0 0.0
        %424 = vmatpush1.msra.mxu0 0.0
        %425 = vmatprep.subr.mxu0 0.0
        %426 = vmatpush1.msra.mxu0 0.0
        %427 = vmatprep.subr.mxu0 0.0
        %428 = vmatpush1.msra.mxu0 0.0
        %429 = vmatprep.subr.mxu0 0.0
        %430 = vmatpush1.msra.mxu0 0.0
        %431 = vmatprep.subr.mxu0 0.0
        %432 = vmatpush1.msra.mxu0 0.0
        %433 = vmatprep.mubr.f32.mxu0 0.0
        %434 = vmatmul.mubr.f32.gmra.mrb[0].mxu0 %v367
        %v435 = vpop.f32.mrb[0].mxu0
        %v436 = vadd.f32 0.0, %v435
        %v437 = vpop.f32.mrb[0].mxu0
        %438 = vdwg.mxu0
        %439 = vst.msk [vmem:[%s270] sm:$0xff] %vm274, %v436
        %v440 = vmul.f32 %v365, 0.25
        %441 = vst.msk [vmem:[%s248] sm:$0xff] %vm351, %v440
        %v442 = vld [vmem:[%s255] sm:$0xff]
        %v443 = vld [vmem:[%s259] sm:$0xff]
        %v444 = vld [vmem:[%s263] sm:$0xff]
        %446 = vrot.lane.b32.xlu0 %v442, 96
        %v447 = vpop.permute.xlu0 %446
        %449 = vrot.lane.b32.xlu0 %v443, 96
        %v450 = vpop.permute.xlu0 %449
        %v451 = vsel %vm274, %v447, 0
        %v453 = vsel %vm274, %v450, 0
        %455 = vmatprep.subr.mxu0 0.0
        %456 = vmatpush1.xpose.msra.mxu0 %v453
        %457 = vmatprep.subr.mxu0 0.0
        %458 = vmatpush1.xpose.msra.mxu0 0.0
        %459 = vmatprep.subr.mxu0 0.0
        %460 = vmatpush1.xpose.msra.mxu0 0.0
        %461 = vmatprep.subr.mxu0 0.0
        %462 = vmatpush1.xpose.msra.mxu0 0.0
        %463 = vmatprep.subr.mxu0 0.0
        %464 = vmatpush1.xpose.msra.mxu0 0.0
        %465 = vmatprep.subr.mxu0 0.0
        %466 = vmatpush1.xpose.msra.mxu0 0.0
        %467 = vmatprep.subr.mxu0 0.0
        %468 = vmatpush1.xpose.msra.mxu0 0.0
        %469 = vmatprep.subr.mxu0 0.0
        %470 = vmatpush1.xpose.msra.mxu0 0.0
        %471 = vmatprep.subr.mxu0 0.0
        %472 = vmatpush1.xpose.msra.mxu0 0.0
        %473 = vmatprep.subr.mxu0 0.0
        %474 = vmatpush1.xpose.msra.mxu0 0.0
        %475 = vmatprep.subr.mxu0 0.0
        %476 = vmatpush1.xpose.msra.mxu0 0.0
        %477 = vmatprep.subr.mxu0 0.0
        %478 = vmatpush1.xpose.msra.mxu0 0.0
        %479 = vmatprep.subr.mxu0 0.0
        %480 = vmatpush1.xpose.msra.mxu0 0.0
        %481 = vmatprep.subr.mxu0 0.0
        %482 = vmatpush1.xpose.msra.mxu0 0.0
        %483 = vmatprep.subr.mxu0 0.0
        %484 = vmatpush1.xpose.msra.mxu0 0.0
        %485 = vmatprep.subr.mxu0 0.0
        %486 = vmatpush1.xpose.msra.mxu0 0.0
        %487 = vmatprep.subr.mxu0 0.0
        %488 = vmatpush1.xpose.msra.mxu0 0.0
        %489 = vmatprep.subr.mxu0 0.0
        %490 = vmatpush1.xpose.msra.mxu0 0.0
        %491 = vmatprep.subr.mxu0 0.0
        %492 = vmatpush1.xpose.msra.mxu0 0.0
        %493 = vmatprep.subr.mxu0 0.0
        %494 = vmatpush1.xpose.msra.mxu0 0.0
        %495 = vmatprep.subr.mxu0 0.0
        %496 = vmatpush1.xpose.msra.mxu0 0.0
        %497 = vmatprep.subr.mxu0 0.0
        %498 = vmatpush1.xpose.msra.mxu0 0.0
        %499 = vmatprep.subr.mxu0 0.0
        %500 = vmatpush1.xpose.msra.mxu0 0.0
        %501 = vmatprep.subr.mxu0 0.0
        %502 = vmatpush1.xpose.msra.mxu0 0.0
        %503 = vmatprep.subr.mxu0 0.0
        %504 = vmatpush1.xpose.msra.mxu0 0.0
        %505 = vmatprep.subr.mxu0 0.0
        %506 = vmatpush1.xpose.msra.mxu0 0.0
        %507 = vmatprep.subr.mxu0 0.0
        %508 = vmatpush1.xpose.msra.mxu0 0.0
        %509 = vmatprep.subr.mxu0 0.0
        %510 = vmatpush1.xpose.msra.mxu0 0.0
        %511 = vmatprep.subr.mxu0 0.0
        %512 = vmatpush1.xpose.msra.mxu0 0.0
        %513 = vmatprep.subr.mxu0 0.0
        %514 = vmatpush1.xpose.msra.mxu0 0.0
        %515 = vmatprep.subr.mxu0 0.0
        %516 = vmatpush1.xpose.msra.mxu0 0.0
        %517 = vmatprep.subr.mxu0 0.0
        %518 = vmatpush1.xpose.msra.mxu0 0.0
        %519 = vmatprep.mubr.f32.mxu0 0.0
        %520 = vmatmul.mubr.f32.gmra.mrb[0].mxu0 %v451
        %v521 = vpop.f32.mrb[0].mxu0
        %v522 = vadd.f32 0.0, %v521
        %v523 = vpop.f32.mrb[0].mxu0
        %524 = vdwg.mxu0
        %v525 = vsel %vm351, %v522, -inf
        %526 = vmax.xlane.f32.xlu0 %v525
        %v527 = vpop.xlane.xlu0 %526
        %v528 = vsub.f32 %v522, %v527
        %v529 = vmul.f32 %v528, 1.442695
        %v530 = vpow.pop %v529
        %v531 = vsel %vm351, %v530, 0.0
        %532 = vadd.xlane.f32.xlu0 %v531
        %v533 = vpop.xlane.xlu0 %532
        %v534 = vrcp.pop %v533
        %v535 = vmul.f32 %v533, %v534
        %v536 = vsub.f32 2.0, %v535
        %v537 = vmul.f32 %v534, %v536
        %v538 = vmul.f32 %v530, %v537
        %540 = vrot.lane.b32.xlu0 %v444, 96
        %v541 = vpop.permute.xlu0 %540
        %v544 = vsel %vm351, %v538, 0
        %546 = vmatprep.subr.mxu0 0.0
        %547 = vmatpush1.msra.mxu0 %v541
        %548 = vmatprep.subr.mxu0 0.0
        %549 = vmatpush1.msra.mxu0 0.0
        %550 = vmatprep.subr.mxu0 0.0
        %551 = vmatpush1.msra.mxu0 0.0
        %552 = vmatprep.subr.mxu0 0.0
        %553 = vmatpush1.msra.mxu0 0.0
        %554 = vmatprep.subr.mxu0 0.0
        %555 = vmatpush1.msra.mxu0 0.0
        %556 = vmatprep.subr.mxu0 0.0
        %557 = vmatpush1.msra.mxu0 0.0
        %558 = vmatprep.subr.mxu0 0.0
        %559 = vmatpush1.msra.mxu0 0.0
        %560 = vmatprep.subr.mxu0 0.0
        %561 = vmatpush1.msra.mxu0 0.0
        %562 = vmatprep.subr.mxu0 0.0
        %563 = vmatpush1.msra.mxu0 0.0
        %564 = vmatprep.subr.mxu0 0.0
        %565 = vmatpush1.msra.mxu0 0.0
        %566 = vmatprep.subr.mxu0 0.0
        %567 = vmatpush1.msra.mxu0 0.0
        %568 = vmatprep.subr.mxu0 0.0
        %569 = vmatpush1.msra.mxu0 0.0
        %570 = vmatprep.subr.mxu0 0.0
        %571 = vmatpush1.msra.mxu0 0.0
        %572 = vmatprep.subr.mxu0 0.0
        %573 = vmatpush1.msra.mxu0 0.0
        %574 = vmatprep.subr.mxu0 0.0
        %575 = vmatpush1.msra.mxu0 0.0
        %576 = vmatprep.subr.mxu0 0.0
        %577 = vmatpush1.msra.mxu0 0.0
        %578 = vmatprep.subr.mxu0 0.0
        %579 = vmatpush1.msra.mxu0 0.0
        %580 = vmatprep.subr.mxu0 0.0
        %581 = vmatpush1.msra.mxu0 0.0
        %582 = vmatprep.subr.mxu0 0.0
        %583 = vmatpush1.msra.mxu0 0.0
        %584 = vmatprep.subr.mxu0 0.0
        %585 = vmatpush1.msra.mxu0 0.0
        %586 = vmatprep.subr.mxu0 0.0
        %587 = vmatpush1.msra.mxu0 0.0
        %588 = vmatprep.subr.mxu0 0.0
        %589 = vmatpush1.msra.mxu0 0.0
        %590 = vmatprep.subr.mxu0 0.0
        %591 = vmatpush1.msra.mxu0 0.0
        %592 = vmatprep.subr.mxu0 0.0
        %593 = vmatpush1.msra.mxu0 0.0
        %594 = vmatprep.subr.mxu0 0.0
        %595 = vmatpush1.msra.mxu0 0.0
        %596 = vmatprep.subr.mxu0 0.0
        %597 = vmatpush1.msra.mxu0 0.0
        %598 = vmatprep.subr.mxu0 0.0
        %599 = vmatpush1.msra.mxu0 0.0
        %600 = vmatprep.subr.mxu0 0.0
        %601 = vmatpush1.msra.mxu0 0.0
        %602 = vmatprep.subr.mxu0 0.0
        %603 = vmatpush1.msra.mxu0 0.0
        %604 = vmatprep.subr.mxu0 0.0
        %605 = vmatpush1.msra.mxu0 0.0
        %606 = vmatprep.subr.mxu0 0.0
        %607 = vmatpush1.msra.mxu0 0.0
        %608 = vmatprep.subr.mxu0 0.0
        %609 = vmatpush1.msra.mxu0 0.0
        %610 = vmatprep.mubr.f32.mxu0 0.0
        %611 = vmatmul.mubr.f32.gmra.mrb[0].mxu0 %v544
        %v612 = vpop.f32.mrb[0].mxu0
        %v613 = vadd.f32 0.0, %v612
        %v614 = vpop.f32.mrb[0].mxu0
        %615 = vdwg.mxu0
        %617 = vrot.lane.b32.xlu0 %v613, 32
        %v618 = vpop.permute.xlu0 %617
        %vm620 = vcmask 523520
        %621 = vst.msk [vmem:[%s270] sm:$0xff] %vm620, %v618
        %v622 = vmul.f32 %v538, 0.25
        %v623 = vld [vmem:[%s248] sm:$0xff]
        %v624 = vadd.f32 %v623, %v622
        %625 = vst.msk [vmem:[%s248] sm:$0xff] %vm351, %v624
        %v626 = vld [vmem:[%s255] sm:$0xff]
        %v627 = vld [vmem:[%s259] sm:$0xff]
        %v628 = vld [vmem:[%s263] sm:$0xff]
        %630 = vrot.lane.b32.xlu0 %v626, 64
        %v631 = vpop.permute.xlu0 %630
        %633 = vrot.lane.b32.xlu0 %v627, 64
        %v634 = vpop.permute.xlu0 %633
        %v635 = vsel %vm274, %v631, 0
        %v637 = vsel %vm274, %v634, 0
        %639 = vmatprep.subr.mxu0 0.0
        %640 = vmatpush1.xpose.msra.mxu0 %v637
        %641 = vmatprep.subr.mxu0 0.0
        %642 = vmatpush1.xpose.msra.mxu0 0.0
        %643 = vmatprep.subr.mxu0 0.0
        %644 = vmatpush1.xpose.msra.mxu0 0.0
        %645 = vmatprep.subr.mxu0 0.0
        %646 = vmatpush1.xpose.msra.mxu0 0.0
        %647 = vmatprep.subr.mxu0 0.0
        %648 = vmatpush1.xpose.msra.mxu0 0.0
        %649 = vmatprep.subr.mxu0 0.0
        %650 = vmatpush1.xpose.msra.mxu0 0.0
        %651 = vmatprep.subr.mxu0 0.0
        %652 = vmatpush1.xpose.msra.mxu0 0.0
        %653 = vmatprep.subr.mxu0 0.0
        %654 = vmatpush1.xpose.msra.mxu0 0.0
        %655 = vmatprep.subr.mxu0 0.0
        %656 = vmatpush1.xpose.msra.mxu0 0.0
        %657 = vmatprep.subr.mxu0 0.0
        %658 = vmatpush1.xpose.msra.mxu0 0.0
        %659 = vmatprep.subr.mxu0 0.0
        %660 = vmatpush1.xpose.msra.mxu0 0.0
        %661 = vmatprep.subr.mxu0 0.0
        %662 = vmatpush1.xpose.msra.mxu0 0.0
        %663 = vmatprep.subr.mxu0 0.0
        %664 = vmatpush1.xpose.msra.mxu0 0.0
        %665 = vmatprep.subr.mxu0 0.0
        %666 = vmatpush1.xpose.msra.mxu0 0.0
        %667 = vmatprep.subr.mxu0 0.0
        %668 = vmatpush1.xpose.msra.mxu0 0.0
        %669 = vmatprep.subr.mxu0 0.0
        %670 = vmatpush1.xpose.msra.mxu0 0.0
        %671 = vmatprep.subr.mxu0 0.0
        %672 = vmatpush1.xpose.msra.mxu0 0.0
        %673 = vmatprep.subr.mxu0 0.0
        %674 = vmatpush1.xpose.msra.mxu0 0.0
        %675 = vmatprep.subr.mxu0 0.0
        %676 = vmatpush1.xpose.msra.mxu0 0.0
        %677 = vmatprep.subr.mxu0 0.0
        %678 = vmatpush1.xpose.msra.mxu0 0.0
        %679 = vmatprep.subr.mxu0 0.0
        %680 = vmatpush1.xpose.msra.mxu0 0.0
        %681 = vmatprep.subr.mxu0 0.0
        %682 = vmatpush1.xpose.msra.mxu0 0.0
        %683 = vmatprep.subr.mxu0 0.0
        %684 = vmatpush1.xpose.msra.mxu0 0.0
        %685 = vmatprep.subr.mxu0 0.0
        %686 = vmatpush1.xpose.msra.mxu0 0.0
        %687 = vmatprep.subr.mxu0 0.0
        %688 = vmatpush1.xpose.msra.mxu0 0.0
        %689 = vmatprep.subr.mxu0 0.0
        %690 = vmatpush1.xpose.msra.mxu0 0.0
        %691 = vmatprep.subr.mxu0 0.0
        %692 = vmatpush1.xpose.msra.mxu0 0.0
        %693 = vmatprep.subr.mxu0 0.0
        %694 = vmatpush1.xpose.msra.mxu0 0.0
        %695 = vmatprep.subr.mxu0 0.0
        %696 = vmatpush1.xpose.msra.mxu0 0.0
        %697 = vmatprep.subr.mxu0 0.0
        %698 = vmatpush1.xpose.msra.mxu0 0.0
        %699 = vmatprep.subr.mxu0 0.0
        %700 = vmatpush1.xpose.msra.mxu0 0.0
        %701 = vmatprep.subr.mxu0 0.0
        %702 = vmatpush1.xpose.msra.mxu0 0.0
        %703 = vmatprep.mubr.f32.mxu0 0.0
        %704 = vmatmul.mubr.f32.gmra.mrb[0].mxu0 %v635
        %v705 = vpop.f32.mrb[0].mxu0
        %v706 = vadd.f32 0.0, %v705
        %v707 = vpop.f32.mrb[0].mxu0
        %708 = vdwg.mxu0
        %v709 = vsel %vm351, %v706, -inf
        %710 = vmax.xlane.f32.xlu0 %v709
        %v711 = vpop.xlane.xlu0 %710
        %v712 = vsub.f32 %v706, %v711
        %v713 = vmul.f32 %v712, 1.442695
        %v714 = vpow.pop %v713
        %v715 = vsel %vm351, %v714, 0.0
        %716 = vadd.xlane.f32.xlu0 %v715
        %v717 = vpop.xlane.xlu0 %716
        %v718 = vrcp.pop %v717
        %v719 = vmul.f32 %v717, %v718
        %v720 = vsub.f32 2.0, %v719
        %v721 = vmul.f32 %v718, %v720
        %v722 = vmul.f32 %v714, %v721
        %724 = vrot.lane.b32.xlu0 %v628, 64
        %v725 = vpop.permute.xlu0 %724
        %v728 = vsel %vm351, %v722, 0
        %730 = vmatprep.subr.mxu0 0.0
        %731 = vmatpush1.msra.mxu0 %v725
        %732 = vmatprep.subr.mxu0 0.0
        %733 = vmatpush1.msra.mxu0 0.0
        %734 = vmatprep.subr.mxu0 0.0
        %735 = vmatpush1.msra.mxu0 0.0
        %736 = vmatprep.subr.mxu0 0.0
        %737 = vmatpush1.msra.mxu0 0.0
        %738 = vmatprep.subr.mxu0 0.0
        %739 = vmatpush1.msra.mxu0 0.0
        %740 = vmatprep.subr.mxu0 0.0
        %741 = vmatpush1.msra.mxu0 0.0
        %742 = vmatprep.subr.mxu0 0.0
        %743 = vmatpush1.msra.mxu0 0.0
        %744 = vmatprep.subr.mxu0 0.0
        %745 = vmatpush1.msra.mxu0 0.0
        %746 = vmatprep.subr.mxu0 0.0
        %747 = vmatpush1.msra.mxu0 0.0
        %748 = vmatprep.subr.mxu0 0.0
        %749 = vmatpush1.msra.mxu0 0.0
        %750 = vmatprep.subr.mxu0 0.0
        %751 = vmatpush1.msra.mxu0 0.0
        %752 = vmatprep.subr.mxu0 0.0
        %753 = vmatpush1.msra.mxu0 0.0
        %754 = vmatprep.subr.mxu0 0.0
        %755 = vmatpush1.msra.mxu0 0.0
        %756 = vmatprep.subr.mxu0 0.0
        %757 = vmatpush1.msra.mxu0 0.0
        %758 = vmatprep.subr.mxu0 0.0
        %759 = vmatpush1.msra.mxu0 0.0
        %760 = vmatprep.subr.mxu0 0.0
        %761 = vmatpush1.msra.mxu0 0.0
        %762 = vmatprep.subr.mxu0 0.0
        %763 = vmatpush1.msra.mxu0 0.0
        %764 = vmatprep.subr.mxu0 0.0
        %765 = vmatpush1.msra.mxu0 0.0
        %766 = vmatprep.subr.mxu0 0.0
        %767 = vmatpush1.msra.mxu0 0.0
        %768 = vmatprep.subr.mxu0 0.0
        %769 = vmatpush1.msra.mxu0 0.0
        %770 = vmatprep.subr.mxu0 0.0
        %771 = vmatpush1.msra.mxu0 0.0
        %772 = vmatprep.subr.mxu0 0.0
        %773 = vmatpush1.msra.mxu0 0.0
        %774 = vmatprep.subr.mxu0 0.0
        %775 = vmatpush1.msra.mxu0 0.0
        %776 = vmatprep.subr.mxu0 0.0
        %777 = vmatpush1.msra.mxu0 0.0
        %778 = vmatprep.subr.mxu0 0.0
        %779 = vmatpush1.msra.mxu0 0.0
        %780 = vmatprep.subr.mxu0 0.0
        %781 = vmatpush1.msra.mxu0 0.0
        %782 = vmatprep.subr.mxu0 0.0
        %783 = vmatpush1.msra.mxu0 0.0
        %784 = vmatprep.subr.mxu0 0.0
        %785 = vmatpush1.msra.mxu0 0.0
        %786 = vmatprep.subr.mxu0 0.0
        %787 = vmatpush1.msra.mxu0 0.0
        %788 = vmatprep.subr.mxu0 0.0
        %789 = vmatpush1.msra.mxu0 0.0
        %790 = vmatprep.subr.mxu0 0.0
        %791 = vmatpush1.msra.mxu0 0.0
        %792 = vmatprep.subr.mxu0 0.0
        %793 = vmatpush1.msra.mxu0 0.0
        %794 = vmatprep.mubr.f32.mxu0 0.0
        %795 = vmatmul.mubr.f32.gmra.mrb[0].mxu0 %v728
        %v796 = vpop.f32.mrb[0].mxu0
        %v797 = vadd.f32 0.0, %v796
        %v798 = vpop.f32.mrb[0].mxu0
        %799 = vdwg.mxu0
        %801 = vrot.lane.b32.xlu0 %v797, 64
        %v802 = vpop.permute.xlu0 %801
        %vm804 = vcmask 785920
        %805 = vst.msk [vmem:[%s270] sm:$0xff] %vm804, %v802
        %v806 = vmul.f32 %v722, 0.25
        %v807 = vld [vmem:[%s248] sm:$0xff]
        %v808 = vadd.f32 %v807, %v806
        %809 = vst.msk [vmem:[%s248] sm:$0xff] %vm351, %v808
        %v810 = vld [vmem:[%s255] sm:$0xff]
        %v811 = vld [vmem:[%s259] sm:$0xff]
        %v812 = vld [vmem:[%s263] sm:$0xff]
        %814 = vrot.lane.b32.xlu0 %v810, 32
        %v815 = vpop.permute.xlu0 %814
        %817 = vrot.lane.b32.xlu0 %v811, 32
        %v818 = vpop.permute.xlu0 %817
        %v819 = vsel %vm274, %v815, 0
        %v821 = vsel %vm274, %v818, 0
        %823 = vmatprep.subr.mxu0 0.0
        %824 = vmatpush1.xpose.msra.mxu0 %v821
        %825 = vmatprep.subr.mxu0 0.0
        %826 = vmatpush1.xpose.msra.mxu0 0.0
        %827 = vmatprep.subr.mxu0 0.0
        %828 = vmatpush1.xpose.msra.mxu0 0.0
        %829 = vmatprep.subr.mxu0 0.0
        %830 = vmatpush1.xpose.msra.mxu0 0.0
        %831 = vmatprep.subr.mxu0 0.0
        %832 = vmatpush1.xpose.msra.mxu0 0.0
        %833 = vmatprep.subr.mxu0 0.0
        %834 = vmatpush1.xpose.msra.mxu0 0.0
        %835 = vmatprep.subr.mxu0 0.0
        %836 = vmatpush1.xpose.msra.mxu0 0.0
        %837 = vmatprep.subr.mxu0 0.0
        %838 = vmatpush1.xpose.msra.mxu0 0.0
        %839 = vmatprep.subr.mxu0 0.0
        %840 = vmatpush1.xpose.msra.mxu0 0.0
        %841 = vmatprep.subr.mxu0 0.0
        %842 = vmatpush1.xpose.msra.mxu0 0.0
        %843 = vmatprep.subr.mxu0 0.0
        %844 = vmatpush1.xpose.msra.mxu0 0.0
        %845 = vmatprep.subr.mxu0 0.0
        %846 = vmatpush1.xpose.msra.mxu0 0.0
        %847 = vmatprep.subr.mxu0 0.0
        %848 = vmatpush1.xpose.msra.mxu0 0.0
        %849 = vmatprep.subr.mxu0 0.0
        %850 = vmatpush1.xpose.msra.mxu0 0.0
        %851 = vmatprep.subr.mxu0 0.0
        %852 = vmatpush1.xpose.msra.mxu0 0.0
        %853 = vmatprep.subr.mxu0 0.0
        %854 = vmatpush1.xpose.msra.mxu0 0.0
        %855 = vmatprep.subr.mxu0 0.0
        %856 = vmatpush1.xpose.msra.mxu0 0.0
        %857 = vmatprep.subr.mxu0 0.0
        %858 = vmatpush1.xpose.msra.mxu0 0.0
        %859 = vmatprep.subr.mxu0 0.0
        %860 = vmatpush1.xpose.msra.mxu0 0.0
        %861 = vmatprep.subr.mxu0 0.0
        %862 = vmatpush1.xpose.msra.mxu0 0.0
        %863 = vmatprep.subr.mxu0 0.0
        %864 = vmatpush1.xpose.msra.mxu0 0.0
        %865 = vmatprep.subr.mxu0 0.0
        %866 = vmatpush1.xpose.msra.mxu0 0.0
        %867 = vmatprep.subr.mxu0 0.0
        %868 = vmatpush1.xpose.msra.mxu0 0.0
        %869 = vmatprep.subr.mxu0 0.0
        %870 = vmatpush1.xpose.msra.mxu0 0.0
        %871 = vmatprep.subr.mxu0 0.0
        %872 = vmatpush1.xpose.msra.mxu0 0.0
        %873 = vmatprep.subr.mxu0 0.0
        %874 = vmatpush1.xpose.msra.mxu0 0.0
        %875 = vmatprep.subr.mxu0 0.0
        %876 = vmatpush1.xpose.msra.mxu0 0.0
        %877 = vmatprep.subr.mxu0 0.0
        %878 = vmatpush1.xpose.msra.mxu0 0.0
        %879 = vmatprep.subr.mxu0 0.0
        %880 = vmatpush1.xpose.msra.mxu0 0.0
        %881 = vmatprep.subr.mxu0 0.0
        %882 = vmatpush1.xpose.msra.mxu0 0.0
        %883 = vmatprep.subr.mxu0 0.0
        %884 = vmatpush1.xpose.msra.mxu0 0.0
        %885 = vmatprep.subr.mxu0 0.0
        %886 = vmatpush1.xpose.msra.mxu0 0.0
        %887 = vmatprep.mubr.f32.mxu0 0.0
        %888 = vmatmul.mubr.f32.gmra.mrb[0].mxu0 %v819
        %v889 = vpop.f32.mrb[0].mxu0
        %v890 = vadd.f32 0.0, %v889
        %v891 = vpop.f32.mrb[0].mxu0
        %892 = vdwg.mxu0
        %v893 = vsel %vm351, %v890, -inf
        %894 = vmax.xlane.f32.xlu0 %v893
        %v895 = vpop.xlane.xlu0 %894
        %v896 = vsub.f32 %v890, %v895
        %v897 = vmul.f32 %v896, 1.442695
        %v898 = vpow.pop %v897
        %v899 = vsel %vm351, %v898, 0.0
        %900 = vadd.xlane.f32.xlu0 %v899
        %v901 = vpop.xlane.xlu0 %900
        %v902 = vrcp.pop %v901
        %v903 = vmul.f32 %v901, %v902
        %v904 = vsub.f32 2.0, %v903
        %v905 = vmul.f32 %v902, %v904
        %v906 = vmul.f32 %v898, %v905
        %908 = vrot.lane.b32.xlu0 %v812, 32
        %v909 = vpop.permute.xlu0 %908
        %v912 = vsel %vm351, %v906, 0
        %914 = vmatprep.subr.mxu0 0.0
        %915 = vmatpush1.msra.mxu0 %v909
        %916 = vmatprep.subr.mxu0 0.0
        %917 = vmatpush1.msra.mxu0 0.0
        %918 = vmatprep.subr.mxu0 0.0
        %919 = vmatpush1.msra.mxu0 0.0
        %920 = vmatprep.subr.mxu0 0.0
        %921 = vmatpush1.msra.mxu0 0.0
        %922 = vmatprep.subr.mxu0 0.0
        %923 = vmatpush1.msra.mxu0 0.0
        %924 = vmatprep.subr.mxu0 0.0
        %925 = vmatpush1.msra.mxu0 0.0
        %926 = vmatprep.subr.mxu0 0.0
        %927 = vmatpush1.msra.mxu0 0.0
        %928 = vmatprep.subr.mxu0 0.0
        %929 = vmatpush1.msra.mxu0 0.0
        %930 = vmatprep.subr.mxu0 0.0
        %931 = vmatpush1.msra.mxu0 0.0
        %932 = vmatprep.subr.mxu0 0.0
        %933 = vmatpush1.msra.mxu0 0.0
        %934 = vmatprep.subr.mxu0 0.0
        %935 = vmatpush1.msra.mxu0 0.0
        %936 = vmatprep.subr.mxu0 0.0
        %937 = vmatpush1.msra.mxu0 0.0
        %938 = vmatprep.subr.mxu0 0.0
        %939 = vmatpush1.msra.mxu0 0.0
        %940 = vmatprep.subr.mxu0 0.0
        %941 = vmatpush1.msra.mxu0 0.0
        %942 = vmatprep.subr.mxu0 0.0
        %943 = vmatpush1.msra.mxu0 0.0
        %944 = vmatprep.subr.mxu0 0.0
        %945 = vmatpush1.msra.mxu0 0.0
        %946 = vmatprep.subr.mxu0 0.0
        %947 = vmatpush1.msra.mxu0 0.0
        %948 = vmatprep.subr.mxu0 0.0
        %949 = vmatpush1.msra.mxu0 0.0
        %950 = vmatprep.subr.mxu0 0.0
        %951 = vmatpush1.msra.mxu0 0.0
        %952 = vmatprep.subr.mxu0 0.0
        %953 = vmatpush1.msra.mxu0 0.0
        %954 = vmatprep.subr.mxu0 0.0
        %955 = vmatpush1.msra.mxu0 0.0
        %956 = vmatprep.subr.mxu0 0.0
        %957 = vmatpush1.msra.mxu0 0.0
        %958 = vmatprep.subr.mxu0 0.0
        %959 = vmatpush1.msra.mxu0 0.0
        %960 = vmatprep.subr.mxu0 0.0
        %961 = vmatpush1.msra.mxu0 0.0
        %962 = vmatprep.subr.mxu0 0.0
        %963 = vmatpush1.msra.mxu0 0.0
        %964 = vmatprep.subr.mxu0 0.0
        %965 = vmatpush1.msra.mxu0 0.0
        %966 = vmatprep.subr.mxu0 0.0
        %967 = vmatpush1.msra.mxu0 0.0
        %968 = vmatprep.subr.mxu0 0.0
        %969 = vmatpush1.msra.mxu0 0.0
        %970 = vmatprep.subr.mxu0 0.0
        %971 = vmatpush1.msra.mxu0 0.0
        %972 = vmatprep.subr.mxu0 0.0
        %973 = vmatpush1.msra.mxu0 0.0
        %974 = vmatprep.subr.mxu0 0.0
        %975 = vmatpush1.msra.mxu0 0.0
        %976 = vmatprep.subr.mxu0 0.0
        %977 = vmatpush1.msra.mxu0 0.0
        %978 = vmatprep.mubr.f32.mxu0 0.0
        %979 = vmatmul.mubr.f32.gmra.mrb[0].mxu0 %v912
        %v980 = vpop.f32.mrb[0].mxu0
        %v981 = vadd.f32 0.0, %v980
        %v982 = vpop.f32.mrb[0].mxu0
        %983 = vdwg.mxu0
        %985 = vrot.lane.b32.xlu0 %v981, 96
        %v986 = vpop.permute.xlu0 %985
        %vm988 = vcmask 1048320
        %989 = vst.msk [vmem:[%s270] sm:$0xff] %vm988, %v986
        %v990 = vmul.f32 %v906, 0.25
        %v991 = vld [vmem:[%s248] sm:$0xff]
        %v992 = vadd.f32 %v991, %v990
        %993 = vst.msk [vmem:[%s248] sm:$0xff] %vm351, %v992
        %p994 = scmp.lt.s32.totalorder %s23, 1
        %s995 = scalar_select %p994, %s23, 1
        %p996 = scmp.lt.s32.totalorder %s24, 0
        %s997 = scalar_select %p996, %s24, 0
        %s998 = sadd.s32 %s997, %s995
        %s999 = smul.addr %s998, 8
        %s1000 = scalar_lea.vmem %s3, %s999
        %s1001 = sand.u32 %s149, 1
        %s1002 = scalar_lea.sflag [#allocation3], %s1001
        %s1003 = sand.u32 %s149, 1
        %s1004 = smul.addr %s1003, 8
        %s1005 = scalar_lea.vmem [#allocation2], %s1004
        // Predicated region
        $region33: #{qmha_forward.4} parent=31 // pred_check
          %p1006 = pneg %p131
        $region34: #{qmha_forward.4} parent=31 // pred_check_branch
          %1008 = sbr.rel (%p1006) target = $region36
        $region35: #{qmha_forward.4} parent=31 // pred_region
          _
        $region36: #{qmha_forward.4} parent=31 // pred_fallthru
          _
        // Predicated region
        $region37: #{qmha_forward.4} parent=31 // pred_check
          %p1009 = pneg %p159
        $region38: #{qmha_forward.4} parent=31 // pred_check_branch
          %1011 = sbr.rel (%p1009) target = $region40
        $region39: #{qmha_forward.4} parent=31 // pred_region
          %s1013 = ssub.s32 128, 128
          %1014 = vsyncadd %s1002, %s1013
          %s1015 = sadd.s32 %s24, %s23
          %s1016 = smul.addr %s1015, 128
          %s1017 = scalar_lea.hbm %s4, %s1016
          %s1019 = sshll.u32 %s1005, 4
          %s1020 = int_to_ptr.vmem [resolvable:$true] %s1019
          %1022 = dma.vmem_to_hbm [thread:$0]  %s1020, 128, %s1017, %s1002
        $region40: #{qmha_forward.4} parent=31 // pred_fallthru
          _
      $region32: #{qmha_forward.4} parent=5 // pred_fallthru
        _
      %p1023 = scmp.le.s32.totalorder 2, %s14
      // Predicated region
      $region41: #{qmha_forward.4} parent=5 // pred_check
        %p1024 = pneg %p1023
      $region42: #{qmha_forward.4} parent=5 // pred_check_branch
        %1026 = sbr.rel (%p1024) target = $region44
      $region43: #{qmha_forward.4} parent=5 // pred_region
        %s1027 = ssub.s32 %s14, 2
        // Predicated region
        $region45: #{qmha_forward.4} parent=43 // pred_check
          %p1028 = pneg %p137
        $region46: #{qmha_forward.4} parent=43 // pred_check_branch
          %1030 = sbr.rel (%p1028) target = $region48
        $region47: #{qmha_forward.4} parent=43 // pred_region
          %p1031 = scmp.lt.s32.totalorder %s25, 1
          %s1032 = scalar_select %p1031, %s25, 1
          %p1033 = scmp.lt.s32.totalorder %s26, 0
          %s1034 = scalar_select %p1033, %s26, 0
          %s1035 = sadd.s32 %s1034, %s1032
          %s1036 = smul.addr %s1035, 8
          %s1037 = scalar_lea.vmem %s3, %s1036
        $region48: #{qmha_forward.4} parent=43 // pred_fallthru
          _
        // Predicated region
        $region49: #{qmha_forward.4} parent=43 // pred_check
          %p1038 = pneg %p165
        $region50: #{qmha_forward.4} parent=43 // pred_check_branch
          %1040 = sbr.rel (%p1038) target = $region52
        $region51: #{qmha_forward.4} parent=43 // pred_region
          %s1041 = sand.u32 %s150, 1
          %s1042 = scalar_lea.sflag [#allocation3], %s1041
          %s1043 = sand.u32 %s150, 1
          %s1044 = smul.addr %s1043, 8
          %s1045 = scalar_lea.vmem [#allocation2], %s1044
          %1046 = dma.done %s1042, 128
        $region52: #{qmha_forward.4} parent=43 // pred_fallthru
          _
      $region44: #{qmha_forward.4} parent=5 // pred_fallthru
        _
    $region6: #{qmha_forward.4} parent=1 // loop_footer
      %s18 = sadd.s32 1, %s14
    $region7: #{qmha_forward.4} parent=1 // loop_footer_branch
      %13 = sbr.rel target = $region3
    $region8: #{qmha_forward.4} parent=1 // loop_exit
      _
    %1047 = vsyncpa [#allocation3], 1
    %s1048 = scalar_lea.sflag [#allocation3], 1
    %1049 = vsyncpa %s1048, 1

</llo_original>
